<compile_context>
chip_gen: v5e
topology: v5e:2x2
jax: 0.10.0
libtpu: 0.0.40
codegen_flags: <defaults>
</compile_context>

<pallas_src>
import functools

import numpy as np
import jax
import jax.numpy as jnp
from jax.experimental import pallas as pl
from jax.experimental.pallas import tpu as pltpu

VMEM = pltpu.MemorySpace.VMEM
EPS = 1e-5  # PyTorch BatchNorm1d default eps


# ---------------------------------------------------------------------------
# Fused Pallas kernel: fc_in -> (equiv + BN + ReLU) x2 -> entity pooling
# ---------------------------------------------------------------------------
def _equiv_hgnet_kernel(
    vals_ref, w_in_ref, b_in_ref,
    pool2_ref, inv2_ref,
    wlt1_ref, wrc1_ref, wg1_ref,
    wlt2_ref, wrc2_ref, wg2_ref,
    w_pool_ref, b_pool_ref,
    o_ref,
    *, m2,
):
    f32 = jnp.float32
    bf16 = jnp.bfloat16
    nnz = vals_ref.shape[0]
    n = pool2_ref.shape[0] // 2          # number of target-entity nodes

    pool2 = pool2_ref[...]               # [2N, nnz] bf16 one-hot (rows: row|col incidence)
    inv2 = inv2_ref[...]                 # [2N, 1]   f32  1/count ('mean' pool)

    # Pair-swap transpose: nnz entries are host-ordered so that the transpose
    # permutation swaps adjacent pairs (0<->1, 2<->3, ...) for the first m2
    # (off-diagonal) entries and is the identity on the trailing diagonals.
    row_id = jax.lax.broadcasted_iota(jnp.int32, (nnz, 1), 0)
    is_even = jnp.bitwise_and(row_id, 1) == 0
    in_pair = row_id < m2

    def transpose_values(x):
        up = jnp.concatenate([x[1:], x[:1]], axis=0)     # up[j] = x[j+1]
        dn = jnp.concatenate([x[-1:], x[:-1]], axis=0)   # dn[j] = x[j-1]
        # wrap-around rows are always masked out (row 0 is even, last row is
        # either odd or a diagonal entry), so the wrap never leaks through.
        return jnp.where(in_pair, jnp.where(is_even, up, dn), x)

    def equiv_layer(x, wlt_ref, wrc_ref, wg_ref):
        a = wg_ref.shape[0]              # input channels
        b = wg_ref.shape[1]              # output channels

        # --- local terms (identity + transpose): one fused K=2a matmul ---
        xb = x.astype(bf16)
        xt = transpose_values(x).astype(bf16)
        acc = jnp.dot(jnp.concatenate([xb, xt], axis=-1), wlt_ref[...],
                      preferred_element_type=f32)                       # [nnz, b]

        # --- pooled terms: one [2N,nnz]x[nnz,a] matmul, f32 1/count scale ---
        p2 = jnp.dot(pool2, xb, preferred_element_type=f32) * inv2      # [2N, a]
        p_g = jnp.mean(x, axis=0, keepdims=True)                        # [1, a]

        # --- channel mix for both broadcast directions: one [N,2a]x[2a,2b] ---
        p_cat = jnp.concatenate([p2[:n], p2[n:]], axis=-1).astype(bf16)  # [N, 2a]
        z = jnp.dot(p_cat, wrc_ref[...], preferred_element_type=f32)     # [N, 2b]
        y2 = jnp.concatenate([z[:, :b], z[:, b:]], axis=0).astype(bf16)  # [2N, b]
        y_g = jnp.dot(p_g.astype(bf16), wg_ref[...],
                      preferred_element_type=f32)                        # [1, b]

        # --- broadcast back: single K=2N transposed-LHS matmul.
        #     pool2.T @ y2 == bcast_row @ y_row + bcast_col @ y_col
        acc = acc + jax.lax.dot_general(
            pool2, y2, (((0,), (0,)), ((), ())), preferred_element_type=f32)
        acc = acc + y_g
        # per-op equivariant bias omitted: batch-stat BatchNorm cancels it.

        # BatchNorm1d(affine=False, batch stats, biased var) over nnz, in f32.
        mean = jnp.mean(acc, axis=0, keepdims=True)
        var = jnp.mean(jnp.square(acc - mean), axis=0, keepdims=True)
        normed = (acc - mean) * jax.lax.rsqrt(var + EPS)
        # ReLU; Dropout(p=0) is the identity.
        return jnp.maximum(normed, 0.0)

    # ---- fc_in (SparseMatrixRelationLinear) ----
    v = jnp.dot(vals_ref[...], w_in_ref[...],
                preferred_element_type=f32) + b_in_ref[...]              # [nnz, 32]

    v = equiv_layer(v, wlt1_ref, wrc1_ref, wg1_ref)                      # [nnz, 64]
    v = equiv_layer(v, wlt2_ref, wrc2_ref, wg2_ref)                      # [nnz, 32]

    # ---- SparseMatrixEntityPoolingLayer (mean over row / col incidences) ----
    q2 = jnp.dot(pool2, v.astype(bf16), preferred_element_type=f32) * inv2  # [2N, c]
    q_cat = jnp.concatenate([q2[:n], q2[n:]], axis=-1)                      # [N, 2c] f32

    out_dim = o_ref.shape[-1]
    if out_dim == 1:
        # lane-dense VPU multiply + lane reduce instead of a 1-lane MXU matmul
        o = jnp.sum(q_cat * w_pool_ref[...], axis=-1, keepdims=True)
    else:
        # general path: rhs-transposed contraction with w_pool_t [out_dim, 2c]
        o = jax.lax.dot_general(q_cat, w_pool_ref[...],
                                (((1,), (1,)), ((), ())),
                                preferred_element_type=f32)
    o_ref[...] = o + b_pool_ref[...]


# ---------------------------------------------------------------------------
# Forward wrapper (single pallas_call)
# ---------------------------------------------------------------------------
def equiv_hgnet_forward(values, params, ops, *, m2, n_nodes, out_dim):
    nnz, c_in = values.shape
    args = (
        values, params["w_in"], params["b_in"],
        ops["pool2"], ops["inv2"],
        *params["l1"], *params["l2"],
        params["w_pool_t"], params["b_pool"],
    )

    # ---- advisory cost estimate for the XLA scheduler ----
    l0 = params["w_in"].shape[1]
    dims = [params["l1"][2].shape, params["l2"][2].shape]   # (a, b) per equiv layer
    c_last = dims[-1][1]
    n2 = 2 * n_nodes
    flops = 2 * nnz * c_in * l0
    for a, b in dims:
        flops += 2 * nnz * (2 * a) * b            # local (identity | transpose)
        flops += 2 * n2 * nnz * a                 # pooling
        flops += 2 * n_nodes * (2 * a) * (2 * b)  # channel mix
        flops += 2 * a * b                        # global mix
        flops += 2 * nnz * n2 * b                 # broadcast back
        flops += 10 * nnz * b                     # BN + ReLU elementwise
    flops += 2 * n2 * nnz * c_last + 2 * n_nodes * 2 * c_last * out_dim
    transcendentals = sum(b for _, b in dims)     # one rsqrt per BN channel
    bytes_in = sum(int(a.size) * a.dtype.itemsize for a in args)
    bytes_out = n_nodes * out_dim * 4
    cost = pl.CostEstimate(flops=int(flops),
                           transcendentals=int(transcendentals),
                           bytes_accessed=int(bytes_in + bytes_out))

    # ---- scoped-VMEM budget: resident operands + live [nnz, width] temps ----
    max_b = max(b for _, b in dims)
    live_temp_bytes = 10 * nnz * max(2 * max_b, 128) * 4
    vmem_limit = int(min(64 * 1024 * 1024,
                         max(2 * (bytes_in + bytes_out + live_temp_bytes),
                             16 * 1024 * 1024)))

    kernel = functools.partial(_equiv_hgnet_kernel, m2=m2)
    return pl.pallas_call(
        kernel,
        out_shape=jax.ShapeDtypeStruct((n_nodes, out_dim), jnp.float32),
        in_specs=[pl.BlockSpec(memory_space=VMEM) for _ in args],
        out_specs=pl.BlockSpec(memory_space=VMEM),
        compiler_params=pltpu.CompilerParams(vmem_limit_bytes=vmem_limit),
        cost_estimate=cost,
    )(*args)


# ---------------------------------------------------------------------------
# Host-side glue: entry ordering + stacked one-hot pooling operator
# ---------------------------------------------------------------------------
def build_symmetric_pattern(mask):
    """Order nnz entries so the transpose permutation is an adjacent pair-swap
    on the first m2 (off-diagonal) entries; diagonal entries go last."""
    n = mask.shape[0]
    rows, cols = [], []
    for i in range(n):
        for j in range(i + 1, n):
            if mask[i, j]:
                rows += [i, j]
                cols += [j, i]
    m2 = len(rows)
    for i in range(n):
        if mask[i, i]:
            rows.append(i)
            cols.append(i)
    return np.asarray(rows, np.int32), np.asarray(cols, np.int32), m2


def build_pool_operator(rows, cols, n):
    """Stacked one-hot mean-pool operator: rows 0..n-1 pool by row incidence,
    rows n..2n-1 pool by col incidence (exact 0/1 in bf16); f32 1/count."""
    node = np.arange(n)
    oh_r = (rows[None, :] == node[:, None]).astype(np.float32)   # [n, nnz]
    oh_c = (cols[None, :] == node[:, None]).astype(np.float32)
    pool2 = np.concatenate([oh_r, oh_c], axis=0)                 # [2n, nnz]
    inv2 = 1.0 / np.maximum(pool2.sum(axis=1, keepdims=True), 1.0)
    # TODO(synk): on v7x, fp8(e4m3) holds 0/1 exactly and would halve this
    # operator's footprint again if mixed fp8 x bf16 matmul is accepted.
    return {
        "pool2": jnp.asarray(pool2, jnp.bfloat16),
        "inv2": jnp.asarray(inv2, jnp.float32),
    }


# ---------------------------------------------------------------------------
if __name__ == "__main__":
    key = jax.random.PRNGKey(0)
    N = 16              # nodes of the (single) target entity
    C_IN = 4            # input_channels
    LAYERS = [32, 64, 32]
    OUT_DIM = 1         # output_dim

    k_mask, k_vals, k_p = jax.random.split(key, 3)

    # symmetric sparsity pattern with every node covered (full diagonal)
    mask = np.asarray(jax.random.uniform(k_mask, (N, N)) < 0.3)
    mask = mask | mask.T
    np.fill_diagonal(mask, True)

    rows, cols, m2 = build_symmetric_pattern(mask)
    assert m2 % 2 == 0, "off-diagonal entries must come in transpose pairs"
    nnz = int(rows.shape[0])

    values = jax.random.normal(k_vals, (nnz, C_IN), dtype=jnp.float32).astype(jnp.bfloat16)
    ops = build_pool_operator(rows, cols, N)

    # deterministic parameter init (Glorot-ish scaling), bf16 weights
    keys = jax.random.split(k_p, 10)

    def init(k, shape, fan_in, dtype=jnp.bfloat16):
        w = jax.random.normal(k, shape, dtype=jnp.float32) / np.sqrt(float(fan_in))
        return w.astype(dtype)

    def equiv_params(k0, k1, k2, a, b):
        # weights of the 7 equivariant ops, pre-packed for the fused matmuls:
        #   local      [2a, b ] = [identity; transpose]
        #   mix        [2a, 2b] = [row-pool; col-pool] x [row-bcast | col-bcast]
        #   global     [ a, b ]
        return (init(k0, (2 * a, b), 7 * a),
                init(k1, (2 * a, 2 * b), 7 * a),
                init(k2, (a, b), 7 * a))

    params = {
        "w_in": init(keys[0], (C_IN, LAYERS[0]), C_IN),
        "b_in": init(keys[1], (1, LAYERS[0]), C_IN, jnp.float32),
        "l1": equiv_params(keys[2], keys[3], keys[4], LAYERS[0], LAYERS[1]),
        "l2": equiv_params(keys[5], keys[6], keys[7], LAYERS[1], LAYERS[2]),
        # pooling-layer linear, stored transposed [out_dim, 2c] for the VPU path
        "w_pool_t": init(keys[8], (OUT_DIM, 2 * LAYERS[-1]), 2 * LAYERS[-1], jnp.float32),
        "b_pool": init(keys[9], (1, OUT_DIM), LAYERS[-1], jnp.float32),
    }

    fwd = jax.jit(functools.partial(
        equiv_hgnet_forward, m2=m2, n_nodes=N, out_dim=OUT_DIM))
    out = jax.block_until_ready(fwd(values, params, ops))
    assert out.shape == (N, OUT_DIM)
    assert bool(jnp.all(jnp.isfinite(out)))
    print("KERNEL_OK")
</pallas_src>

<mosaic_0001>
module attributes {stable_mosaic.version = 11 : i64} {
  func.func @_equiv_hgnet_kernel(%arg0: memref<156x4xbf16, #tpu.memory_space<vmem>>, %arg1: memref<4x32xbf16, #tpu.memory_space<vmem>>, %arg2: memref<1x32xf32, #tpu.memory_space<vmem>>, %arg3: memref<32x156xbf16, #tpu.memory_space<vmem>>, %arg4: memref<32x1xf32, #tpu.memory_space<vmem>>, %arg5: memref<64x64xbf16, #tpu.memory_space<vmem>>, %arg6: memref<64x128xbf16, #tpu.memory_space<vmem>>, %arg7: memref<32x64xbf16, #tpu.memory_space<vmem>>, %arg8: memref<128x32xbf16, #tpu.memory_space<vmem>>, %arg9: memref<128x64xbf16, #tpu.memory_space<vmem>>, %arg10: memref<64x32xbf16, #tpu.memory_space<vmem>>, %arg11: memref<1x64xf32, #tpu.memory_space<vmem>>, %arg12: memref<1x1xf32, #tpu.memory_space<vmem>>, %arg13: memref<16x1xf32, #tpu.memory_space<vmem>>) attributes {dimension_semantics = [], scalar_prefetch = 0 : i64, scratch_operands = 0 : i64, tpu.core_type = #tpu.core_type<tc>} {
    %c0 = arith.constant 0 : index
    %c0_0 = arith.constant 0 : index
    %0 = vector.load %arg3[%c0, %c0_0] : memref<32x156xbf16, #tpu.memory_space<vmem>>, vector<32x156xbf16>
    %c0_1 = arith.constant 0 : index
    %c0_2 = arith.constant 0 : index
    %1 = vector.load %arg4[%c0_1, %c0_2] : memref<32x1xf32, #tpu.memory_space<vmem>>, vector<32x1xf32>
    %2 = tpu.iota {dimensions = array<i32: 0>} : vector<156x1xi32>
    %c1_i32 = arith.constant 1 : i32
    %3 = vector.broadcast %c1_i32 : i32 to vector<156x1xi32>
    %4 = arith.andi %2, %3 : vector<156x1xi32>
    %c0_i32 = arith.constant 0 : i32
    %5 = vector.broadcast %c0_i32 : i32 to vector<156x1xi32>
    %6 = arith.cmpi eq, %4, %5 : vector<156x1xi32>
    %c140_i32 = arith.constant 140 : i32
    %7 = vector.broadcast %c140_i32 : i32 to vector<156x1xi32>
    %8 = arith.cmpi slt, %2, %7 : vector<156x1xi32>
    %c0_3 = arith.constant 0 : index
    %c0_4 = arith.constant 0 : index
    %9 = vector.load %arg0[%c0_3, %c0_4] : memref<156x4xbf16, #tpu.memory_space<vmem>>, vector<156x4xbf16>
    %c0_5 = arith.constant 0 : index
    %c0_6 = arith.constant 0 : index
    %10 = vector.load %arg1[%c0_5, %c0_6] : memref<4x32xbf16, #tpu.memory_space<vmem>>, vector<4x32xbf16>
    %cst = arith.constant dense<0.000000e+00> : vector<156x32xf32>
    %11 = tpu.matmul %9, %10, %cst {dimension_numbers = #tpu.dot_dimension_numbers<[1], [0], [0], [1], [0, 0, 1, 1], [], []>} : vector<156x4xbf16>, vector<4x32xbf16>, vector<156x32xf32> -> vector<156x32xf32>
    %c0_7 = arith.constant 0 : index
    %c0_8 = arith.constant 0 : index
    %12 = vector.load %arg2[%c0_7, %c0_8] : memref<1x32xf32, #tpu.memory_space<vmem>>, vector<1x32xf32>
    %13 = vector.broadcast %12 : vector<1x32xf32> to vector<156x32xf32>
    %14 = arith.addf %11, %13 : vector<156x32xf32>
    %15 = arith.truncf %14 : vector<156x32xf32> to vector<156x32xbf16>
    %16 = vector.extract_strided_slice %14 {offsets = [1, 0], sizes = [155, 32], strides = [1, 1]} : vector<156x32xf32> to vector<155x32xf32>
    %17 = vector.extract_strided_slice %14 {offsets = [0, 0], sizes = [1, 32], strides = [1, 1]} : vector<156x32xf32> to vector<1x32xf32>
    %18 = tpu.concatenate %16, %17 in 0 : vector<155x32xf32>, vector<1x32xf32> -> vector<156x32xf32>
    %19 = vector.extract_strided_slice %14 {offsets = [155, 0], sizes = [1, 32], strides = [1, 1]} : vector<156x32xf32> to vector<1x32xf32>
    %20 = vector.extract_strided_slice %14 {offsets = [0, 0], sizes = [155, 32], strides = [1, 1]} : vector<156x32xf32> to vector<155x32xf32>
    %21 = tpu.concatenate %19, %20 in 0 : vector<1x32xf32>, vector<155x32xf32> -> vector<156x32xf32>
    %22 = vector.shape_cast %6 : vector<156x1xi1> to vector<156x1xi1>
    %23 = vector.broadcast %22 : vector<156x1xi1> to vector<156x32xi1>
    %24 = arith.select %23, %18, %21 : vector<156x32xi1>, vector<156x32xf32>
    %25 = vector.shape_cast %8 : vector<156x1xi1> to vector<156x1xi1>
    %26 = vector.broadcast %25 : vector<156x1xi1> to vector<156x32xi1>
    %27 = arith.select %26, %24, %14 : vector<156x32xi1>, vector<156x32xf32>
    %28 = arith.truncf %27 : vector<156x32xf32> to vector<156x32xbf16>
    %29 = tpu.concatenate %15, %28 in 1 : vector<156x32xbf16>, vector<156x32xbf16> -> vector<156x64xbf16>
    %c0_9 = arith.constant 0 : index
    %c0_10 = arith.constant 0 : index
    %30 = vector.load %arg5[%c0_9, %c0_10] : memref<64x64xbf16, #tpu.memory_space<vmem>>, vector<64x64xbf16>
    %cst_11 = arith.constant dense<0.000000e+00> : vector<156x64xf32>
    %31 = tpu.matmul %29, %30, %cst_11 {dimension_numbers = #tpu.dot_dimension_numbers<[1], [0], [0], [1], [0, 0, 1, 1], [], []>} : vector<156x64xbf16>, vector<64x64xbf16>, vector<156x64xf32> -> vector<156x64xf32>
    %cst_12 = arith.constant dense<0.000000e+00> : vector<32x32xf32>
    %32 = tpu.matmul %0, %15, %cst_12 {dimension_numbers = #tpu.dot_dimension_numbers<[1], [0], [0], [1], [0, 0, 1, 1], [], []>} : vector<32x156xbf16>, vector<156x32xbf16>, vector<32x32xf32> -> vector<32x32xf32>
    %33 = vector.broadcast %1 : vector<32x1xf32> to vector<32x32xf32>
    %34 = arith.mulf %32, %33 : vector<32x32xf32>
    %cst_13 = arith.constant dense<0.000000e+00> : vector<32xf32>
    %35 = vector.multi_reduction <add>, %14, %cst_13 [0] : vector<156x32xf32> to vector<32xf32>
    %36 = vector.shape_cast %35 : vector<32xf32> to vector<1x32xf32>
    %cst_14 = arith.constant 1.560000e+02 : f32
    %37 = vector.broadcast %cst_14 : f32 to vector<1x32xf32>
    %38 = arith.divf %36, %37 : vector<1x32xf32>
    %39 = vector.extract_strided_slice %34 {offsets = [0, 0], sizes = [16, 32], strides = [1, 1]} : vector<32x32xf32> to vector<16x32xf32>
    %40 = vector.extract_strided_slice %34 {offsets = [16, 0], sizes = [16, 32], strides = [1, 1]} : vector<32x32xf32> to vector<16x32xf32>
    %41 = tpu.concatenate %39, %40 in 1 : vector<16x32xf32>, vector<16x32xf32> -> vector<16x64xf32>
    %42 = arith.truncf %41 : vector<16x64xf32> to vector<16x64xbf16>
    %c0_15 = arith.constant 0 : index
    %c0_16 = arith.constant 0 : index
    %43 = vector.load %arg6[%c0_15, %c0_16] : memref<64x128xbf16, #tpu.memory_space<vmem>>, vector<64x128xbf16>
    %cst_17 = arith.constant dense<0.000000e+00> : vector<16x128xf32>
    %44 = tpu.matmul %42, %43, %cst_17 {dimension_numbers = #tpu.dot_dimension_numbers<[1], [0], [0], [1], [0, 0, 1, 1], [], []>} : vector<16x64xbf16>, vector<64x128xbf16>, vector<16x128xf32> -> vector<16x128xf32>
    %45 = vector.extract_strided_slice %44 {offsets = [0, 0], sizes = [16, 64], strides = [1, 1]} : vector<16x128xf32> to vector<16x64xf32>
    %46 = vector.extract_strided_slice %44 {offsets = [0, 64], sizes = [16, 64], strides = [1, 1]} : vector<16x128xf32> to vector<16x64xf32>
    %47 = tpu.concatenate %45, %46 in 0 : vector<16x64xf32>, vector<16x64xf32> -> vector<32x64xf32>
    %48 = arith.truncf %47 : vector<32x64xf32> to vector<32x64xbf16>
    %49 = arith.truncf %38 : vector<1x32xf32> to vector<1x32xbf16>
    %c0_18 = arith.constant 0 : index
    %c0_19 = arith.constant 0 : index
    %50 = vector.load %arg7[%c0_18, %c0_19] : memref<32x64xbf16, #tpu.memory_space<vmem>>, vector<32x64xbf16>
    %cst_20 = arith.constant dense<0.000000e+00> : vector<1x64xf32>
    %51 = tpu.matmul %49, %50, %cst_20 {dimension_numbers = #tpu.dot_dimension_numbers<[1], [0], [0], [1], [0, 0, 1, 1], [], []>} : vector<1x32xbf16>, vector<32x64xbf16>, vector<1x64xf32> -> vector<1x64xf32>
    %cst_21 = arith.constant dense<0.000000e+00> : vector<156x64xf32>
    %52 = tpu.matmul %0, %48, %cst_21 {dimension_numbers = #tpu.dot_dimension_numbers<[0], [0], [1], [1], [0, 1, 1, 1], [], []>} : vector<32x156xbf16>, vector<32x64xbf16>, vector<156x64xf32> -> vector<156x64xf32>
    %53 = arith.addf %31, %52 : vector<156x64xf32>
    %54 = vector.broadcast %51 : vector<1x64xf32> to vector<156x64xf32>
    %55 = arith.addf %53, %54 : vector<156x64xf32>
    %cst_22 = arith.constant dense<0.000000e+00> : vector<64xf32>
    %56 = vector.multi_reduction <add>, %55, %cst_22 [0] : vector<156x64xf32> to vector<64xf32>
    %57 = vector.shape_cast %56 : vector<64xf32> to vector<1x64xf32>
    %cst_23 = arith.constant 1.560000e+02 : f32
    %58 = vector.broadcast %cst_23 : f32 to vector<1x64xf32>
    %59 = arith.divf %57, %58 : vector<1x64xf32>
    %60 = vector.broadcast %59 : vector<1x64xf32> to vector<156x64xf32>
    %61 = arith.subf %55, %60 : vector<156x64xf32>
    %62 = arith.mulf %61, %61 : vector<156x64xf32>
    %cst_24 = arith.constant dense<0.000000e+00> : vector<64xf32>
    %63 = vector.multi_reduction <add>, %62, %cst_24 [0] : vector<156x64xf32> to vector<64xf32>
    %64 = vector.shape_cast %63 : vector<64xf32> to vector<1x64xf32>
    %cst_25 = arith.constant 1.560000e+02 : f32
    %65 = vector.broadcast %cst_25 : f32 to vector<1x64xf32>
    %66 = arith.divf %64, %65 : vector<1x64xf32>
    %67 = vector.broadcast %59 : vector<1x64xf32> to vector<156x64xf32>
    %68 = arith.subf %55, %67 : vector<156x64xf32>
    %cst_26 = arith.constant 9.99999974E-6 : f32
    %69 = vector.broadcast %cst_26 : f32 to vector<1x64xf32>
    %70 = arith.addf %66, %69 : vector<1x64xf32>
    %71 = math.rsqrt %70 : vector<1x64xf32>
    %72 = vector.broadcast %71 : vector<1x64xf32> to vector<156x64xf32>
    %73 = arith.mulf %68, %72 : vector<156x64xf32>
    %cst_27 = arith.constant 0.000000e+00 : f32
    %74 = vector.broadcast %cst_27 : f32 to vector<156x64xf32>
    %75 = arith.maximumf %73, %74 : vector<156x64xf32>
    %76 = arith.truncf %75 : vector<156x64xf32> to vector<156x64xbf16>
    %77 = vector.extract_strided_slice %75 {offsets = [1, 0], sizes = [155, 64], strides = [1, 1]} : vector<156x64xf32> to vector<155x64xf32>
    %78 = vector.extract_strided_slice %75 {offsets = [0, 0], sizes = [1, 64], strides = [1, 1]} : vector<156x64xf32> to vector<1x64xf32>
    %79 = tpu.concatenate %77, %78 in 0 : vector<155x64xf32>, vector<1x64xf32> -> vector<156x64xf32>
    %80 = vector.extract_strided_slice %75 {offsets = [155, 0], sizes = [1, 64], strides = [1, 1]} : vector<156x64xf32> to vector<1x64xf32>
    %81 = vector.extract_strided_slice %75 {offsets = [0, 0], sizes = [155, 64], strides = [1, 1]} : vector<156x64xf32> to vector<155x64xf32>
    %82 = tpu.concatenate %80, %81 in 0 : vector<1x64xf32>, vector<155x64xf32> -> vector<156x64xf32>
    %83 = vector.shape_cast %6 : vector<156x1xi1> to vector<156x1xi1>
    %84 = vector.broadcast %83 : vector<156x1xi1> to vector<156x64xi1>
    %85 = arith.select %84, %79, %82 : vector<156x64xi1>, vector<156x64xf32>
    %86 = vector.shape_cast %8 : vector<156x1xi1> to vector<156x1xi1>
    %87 = vector.broadcast %86 : vector<156x1xi1> to vector<156x64xi1>
    %88 = arith.select %87, %85, %75 : vector<156x64xi1>, vector<156x64xf32>
    %89 = arith.truncf %88 : vector<156x64xf32> to vector<156x64xbf16>
    %90 = tpu.concatenate %76, %89 in 1 : vector<156x64xbf16>, vector<156x64xbf16> -> vector<156x128xbf16>
    %c0_28 = arith.constant 0 : index
    %c0_29 = arith.constant 0 : index
    %91 = vector.load %arg8[%c0_28, %c0_29] : memref<128x32xbf16, #tpu.memory_space<vmem>>, vector<128x32xbf16>
    %cst_30 = arith.constant dense<0.000000e+00> : vector<156x32xf32>
    %92 = tpu.matmul %90, %91, %cst_30 {dimension_numbers = #tpu.dot_dimension_numbers<[1], [0], [0], [1], [0, 0, 1, 1], [], []>} : vector<156x128xbf16>, vector<128x32xbf16>, vector<156x32xf32> -> vector<156x32xf32>
    %cst_31 = arith.constant dense<0.000000e+00> : vector<32x64xf32>
    %93 = tpu.matmul %0, %76, %cst_31 {dimension_numbers = #tpu.dot_dimension_numbers<[1], [0], [0], [1], [0, 0, 1, 1], [], []>} : vector<32x156xbf16>, vector<156x64xbf16>, vector<32x64xf32> -> vector<32x64xf32>
    %94 = vector.broadcast %1 : vector<32x1xf32> to vector<32x64xf32>
    %95 = arith.mulf %93, %94 : vector<32x64xf32>
    %cst_32 = arith.constant dense<0.000000e+00> : vector<64xf32>
    %96 = vector.multi_reduction <add>, %75, %cst_32 [0] : vector<156x64xf32> to vector<64xf32>
    %97 = vector.shape_cast %96 : vector<64xf32> to vector<1x64xf32>
    %cst_33 = arith.constant 1.560000e+02 : f32
    %98 = vector.broadcast %cst_33 : f32 to vector<1x64xf32>
    %99 = arith.divf %97, %98 : vector<1x64xf32>
    %100 = vector.extract_strided_slice %95 {offsets = [0, 0], sizes = [16, 64], strides = [1, 1]} : vector<32x64xf32> to vector<16x64xf32>
    %101 = vector.extract_strided_slice %95 {offsets = [16, 0], sizes = [16, 64], strides = [1, 1]} : vector<32x64xf32> to vector<16x64xf32>
    %102 = tpu.concatenate %100, %101 in 1 : vector<16x64xf32>, vector<16x64xf32> -> vector<16x128xf32>
    %103 = arith.truncf %102 : vector<16x128xf32> to vector<16x128xbf16>
    %c0_34 = arith.constant 0 : index
    %c0_35 = arith.constant 0 : index
    %104 = vector.load %arg9[%c0_34, %c0_35] : memref<128x64xbf16, #tpu.memory_space<vmem>>, vector<128x64xbf16>
    %cst_36 = arith.constant dense<0.000000e+00> : vector<16x64xf32>
    %105 = tpu.matmul %103, %104, %cst_36 {dimension_numbers = #tpu.dot_dimension_numbers<[1], [0], [0], [1], [0, 0, 1, 1], [], []>} : vector<16x128xbf16>, vector<128x64xbf16>, vector<16x64xf32> -> vector<16x64xf32>
    %106 = vector.extract_strided_slice %105 {offsets = [0, 0], sizes = [16, 32], strides = [1, 1]} : vector<16x64xf32> to vector<16x32xf32>
    %107 = vector.extract_strided_slice %105 {offsets = [0, 32], sizes = [16, 32], strides = [1, 1]} : vector<16x64xf32> to vector<16x32xf32>
    %108 = tpu.concatenate %106, %107 in 0 : vector<16x32xf32>, vector<16x32xf32> -> vector<32x32xf32>
    %109 = arith.truncf %108 : vector<32x32xf32> to vector<32x32xbf16>
    %110 = arith.truncf %99 : vector<1x64xf32> to vector<1x64xbf16>
    %c0_37 = arith.constant 0 : index
    %c0_38 = arith.constant 0 : index
    %111 = vector.load %arg10[%c0_37, %c0_38] : memref<64x32xbf16, #tpu.memory_space<vmem>>, vector<64x32xbf16>
    %cst_39 = arith.constant dense<0.000000e+00> : vector<1x32xf32>
    %112 = tpu.matmul %110, %111, %cst_39 {dimension_numbers = #tpu.dot_dimension_numbers<[1], [0], [0], [1], [0, 0, 1, 1], [], []>} : vector<1x64xbf16>, vector<64x32xbf16>, vector<1x32xf32> -> vector<1x32xf32>
    %cst_40 = arith.constant dense<0.000000e+00> : vector<156x32xf32>
    %113 = tpu.matmul %0, %109, %cst_40 {dimension_numbers = #tpu.dot_dimension_numbers<[0], [0], [1], [1], [0, 1, 1, 1], [], []>} : vector<32x156xbf16>, vector<32x32xbf16>, vector<156x32xf32> -> vector<156x32xf32>
    %114 = arith.addf %92, %113 : vector<156x32xf32>
    %115 = vector.broadcast %112 : vector<1x32xf32> to vector<156x32xf32>
    %116 = arith.addf %114, %115 : vector<156x32xf32>
    %cst_41 = arith.constant dense<0.000000e+00> : vector<32xf32>
    %117 = vector.multi_reduction <add>, %116, %cst_41 [0] : vector<156x32xf32> to vector<32xf32>
    %118 = vector.shape_cast %117 : vector<32xf32> to vector<1x32xf32>
    %cst_42 = arith.constant 1.560000e+02 : f32
    %119 = vector.broadcast %cst_42 : f32 to vector<1x32xf32>
    %120 = arith.divf %118, %119 : vector<1x32xf32>
    %121 = vector.broadcast %120 : vector<1x32xf32> to vector<156x32xf32>
    %122 = arith.subf %116, %121 : vector<156x32xf32>
    %123 = arith.mulf %122, %122 : vector<156x32xf32>
    %cst_43 = arith.constant dense<0.000000e+00> : vector<32xf32>
    %124 = vector.multi_reduction <add>, %123, %cst_43 [0] : vector<156x32xf32> to vector<32xf32>
    %125 = vector.shape_cast %124 : vector<32xf32> to vector<1x32xf32>
    %cst_44 = arith.constant 1.560000e+02 : f32
    %126 = vector.broadcast %cst_44 : f32 to vector<1x32xf32>
    %127 = arith.divf %125, %126 : vector<1x32xf32>
    %128 = vector.broadcast %120 : vector<1x32xf32> to vector<156x32xf32>
    %129 = arith.subf %116, %128 : vector<156x32xf32>
    %cst_45 = arith.constant 9.99999974E-6 : f32
    %130 = vector.broadcast %cst_45 : f32 to vector<1x32xf32>
    %131 = arith.addf %127, %130 : vector<1x32xf32>
    %132 = math.rsqrt %131 : vector<1x32xf32>
    %133 = vector.broadcast %132 : vector<1x32xf32> to vector<156x32xf32>
    %134 = arith.mulf %129, %133 : vector<156x32xf32>
    %cst_46 = arith.constant 0.000000e+00 : f32
    %135 = vector.broadcast %cst_46 : f32 to vector<156x32xf32>
    %136 = arith.maximumf %134, %135 : vector<156x32xf32>
    %137 = arith.truncf %136 : vector<156x32xf32> to vector<156x32xbf16>
    %cst_47 = arith.constant dense<0.000000e+00> : vector<32x32xf32>
    %138 = tpu.matmul %0, %137, %cst_47 {dimension_numbers = #tpu.dot_dimension_numbers<[1], [0], [0], [1], [0, 0, 1, 1], [], []>} : vector<32x156xbf16>, vector<156x32xbf16>, vector<32x32xf32> -> vector<32x32xf32>
    %139 = vector.broadcast %1 : vector<32x1xf32> to vector<32x32xf32>
    %140 = arith.mulf %138, %139 : vector<32x32xf32>
    %141 = vector.extract_strided_slice %140 {offsets = [0, 0], sizes = [16, 32], strides = [1, 1]} : vector<32x32xf32> to vector<16x32xf32>
    %142 = vector.extract_strided_slice %140 {offsets = [16, 0], sizes = [16, 32], strides = [1, 1]} : vector<32x32xf32> to vector<16x32xf32>
    %143 = tpu.concatenate %141, %142 in 1 : vector<16x32xf32>, vector<16x32xf32> -> vector<16x64xf32>
    %c0_48 = arith.constant 0 : index
    %c0_49 = arith.constant 0 : index
    %144 = vector.load %arg11[%c0_48, %c0_49] : memref<1x64xf32, #tpu.memory_space<vmem>>, vector<1x64xf32>
    %145 = vector.broadcast %144 : vector<1x64xf32> to vector<16x64xf32>
    %146 = arith.mulf %143, %145 : vector<16x64xf32>
    %cst_50 = arith.constant dense<0.000000e+00> : vector<16xf32>
    %147 = vector.multi_reduction <add>, %146, %cst_50 [1] : vector<16x64xf32> to vector<16xf32>
    %148 = vector.shape_cast %147 : vector<16xf32> to vector<16x1xf32>
    %c0_51 = arith.constant 0 : index
    %c0_52 = arith.constant 0 : index
    %149 = vector.load %arg12[%c0_51, %c0_52] : memref<1x1xf32, #tpu.memory_space<vmem>>, vector<1x1xf32>
    %150 = vector.broadcast %149 : vector<1x1xf32> to vector<16x1xf32>
    %151 = arith.addf %148, %150 : vector<16x1xf32>
    %c0_53 = arith.constant 0 : index
    %c0_54 = arith.constant 0 : index
    %152 = vector.load %arg13[%c0_53, %c0_54] : memref<16x1xf32, #tpu.memory_space<vmem>>, vector<16x1xf32>
    tpu.vector_store %arg13[%c0_53, %c0_54], %151 {strides = array<i32>} : memref<16x1xf32, #tpu.memory_space<vmem>>, vector<16x1xf32>,
    return
  }
}

</mosaic_0001>

<llo_original>
// kernel: equiv_hgnet_forward.1
$region0: #{equiv_hgnet_forward.1}
  #allocation0 [shape = 'u32[]', space=smem, size = 0x4, offset = 0x4, fixed_abs, tag = 'smem constant byte address 0x4 - core index']
  #allocation1 [shape = 'u32[72,128]{1,0:T(1,128)}', space=vmem, size = 0x9000, scoped, tag = 'internal scratch']
  #allocation2 [shape = 'f32[1,1]{1,0:T(1,128)S(1)}', space=vmem, size = 0x200, scoped, tag = 'scoped memory for equiv_hgnet_forward.1']
  %s0 = inlined_call_operand.vmem [shape: bf16[156,4], index: 0, kind: input, shape index: {}]
  %s1 = inlined_call_operand.vmem [shape: bf16[4,32], index: 1, kind: input, shape index: {}]
  %s2 = inlined_call_operand.vmem [shape: f32[1,32], index: 2, kind: input, shape index: {}]
  %s3 = inlined_call_operand.vmem [shape: bf16[32,156], index: 3, kind: input, shape index: {}]
  %s4 = inlined_call_operand.vmem [shape: f32[32,1], index: 4, kind: input, shape index: {}]
  %s5 = inlined_call_operand.vmem [shape: bf16[64,64], index: 5, kind: input, shape index: {}]
  %s6 = inlined_call_operand.vmem [shape: bf16[64,128], index: 6, kind: input, shape index: {}]
  %s7 = inlined_call_operand.vmem [shape: bf16[32,64], index: 7, kind: input, shape index: {}]
  %s8 = inlined_call_operand.vmem [shape: bf16[128,32], index: 8, kind: input, shape index: {}]
  %s9 = inlined_call_operand.vmem [shape: bf16[128,64], index: 9, kind: input, shape index: {}]
  %s10 = inlined_call_operand.vmem [shape: bf16[64,32], index: 10, kind: input, shape index: {}]
  %s11 = inlined_call_operand.vmem [shape: f32[1,64], index: 11, kind: input, shape index: {}]
  %s12 = inlined_call_operand.<no memory space> [shape: f32[1,1], index: 12, kind: input, shape index: {}]
  %s13 = inlined_call_operand.vmem [shape: f32[16,1], index: 13, kind: output, shape index: {}]
  %s14 = sld [smem:[#allocation0]]
  $region62: #{equiv_hgnet_forward.1} parent=0
    _
  %s16 = ssub.s32 1, %s14
  %s17 = scalar_select 0, %s16, %s14
  %v18 = vstv %s12
  %19 = vst [vmem:[#allocation2] sm:$0x1] %v18
  // Predicated region
  $region2: #{equiv_hgnet_forward.1} parent=0 // pred_check
    _
  $region3: #{equiv_hgnet_forward.1} parent=0 // pred_check_branch
    %21 = sbr.rel (0) target = $region5
  $region4: #{equiv_hgnet_forward.1} parent=0 // pred_region
    _
  $region5: #{equiv_hgnet_forward.1} parent=0 // pred_fallthru
    _
  // Predicated region
  $region6: #{equiv_hgnet_forward.1} parent=0 // pred_check
    _
  $region7: #{equiv_hgnet_forward.1} parent=0 // pred_check_branch
    %23 = sbr.rel (0) target = $region9
  $region8: #{equiv_hgnet_forward.1} parent=0 // pred_region
    _
  $region9: #{equiv_hgnet_forward.1} parent=0 // pred_fallthru
    _
  // Predicated region
  $region10: #{equiv_hgnet_forward.1} parent=0 // pred_check
    _
  $region11: #{equiv_hgnet_forward.1} parent=0 // pred_check_branch
    %25 = sbr.rel (0) target = $region13
  $region12: #{equiv_hgnet_forward.1} parent=0 // pred_region
    _
  $region13: #{equiv_hgnet_forward.1} parent=0 // pred_fallthru
    _
  // Predicated region
  $region14: #{equiv_hgnet_forward.1} parent=0 // pred_check
    _
  $region15: #{equiv_hgnet_forward.1} parent=0 // pred_check_branch
    %27 = sbr.rel (0) target = $region17
  $region16: #{equiv_hgnet_forward.1} parent=0 // pred_region
    _
  $region17: #{equiv_hgnet_forward.1} parent=0 // pred_fallthru
    _
  // Predicated region
  $region18: #{equiv_hgnet_forward.1} parent=0 // pred_check
    _
  $region19: #{equiv_hgnet_forward.1} parent=0 // pred_check_branch
    %29 = sbr.rel (0) target = $region21
  $region20: #{equiv_hgnet_forward.1} parent=0 // pred_region
    _
  $region21: #{equiv_hgnet_forward.1} parent=0 // pred_fallthru
    _
  // Predicated region
  $region22: #{equiv_hgnet_forward.1} parent=0 // pred_check
    _
  $region23: #{equiv_hgnet_forward.1} parent=0 // pred_check_branch
    %31 = sbr.rel (0) target = $region25
  $region24: #{equiv_hgnet_forward.1} parent=0 // pred_region
    _
  $region25: #{equiv_hgnet_forward.1} parent=0 // pred_fallthru
    _
  // Predicated region
  $region26: #{equiv_hgnet_forward.1} parent=0 // pred_check
    _
  $region27: #{equiv_hgnet_forward.1} parent=0 // pred_check_branch
    %33 = sbr.rel (0) target = $region29
  $region28: #{equiv_hgnet_forward.1} parent=0 // pred_region
    _
  $region29: #{equiv_hgnet_forward.1} parent=0 // pred_fallthru
    _
  // Predicated region
  $region30: #{equiv_hgnet_forward.1} parent=0 // pred_check
    _
  $region31: #{equiv_hgnet_forward.1} parent=0 // pred_check_branch
    %35 = sbr.rel (0) target = $region33
  $region32: #{equiv_hgnet_forward.1} parent=0 // pred_region
    _
  $region33: #{equiv_hgnet_forward.1} parent=0 // pred_fallthru
    _
  // Predicated region
  $region34: #{equiv_hgnet_forward.1} parent=0 // pred_check
    _
  $region35: #{equiv_hgnet_forward.1} parent=0 // pred_check_branch
    %37 = sbr.rel (0) target = $region37
  $region36: #{equiv_hgnet_forward.1} parent=0 // pred_region
    _
  $region37: #{equiv_hgnet_forward.1} parent=0 // pred_fallthru
    _
  // Predicated region
  $region38: #{equiv_hgnet_forward.1} parent=0 // pred_check
    _
  $region39: #{equiv_hgnet_forward.1} parent=0 // pred_check_branch
    %39 = sbr.rel (0) target = $region41
  $region40: #{equiv_hgnet_forward.1} parent=0 // pred_region
    _
  $region41: #{equiv_hgnet_forward.1} parent=0 // pred_fallthru
    _
  // Predicated region
  $region42: #{equiv_hgnet_forward.1} parent=0 // pred_check
    _
  $region43: #{equiv_hgnet_forward.1} parent=0 // pred_check_branch
    %41 = sbr.rel (0) target = $region45
  $region44: #{equiv_hgnet_forward.1} parent=0 // pred_region
    _
  $region45: #{equiv_hgnet_forward.1} parent=0 // pred_fallthru
    _
  // Predicated region
  $region46: #{equiv_hgnet_forward.1} parent=0 // pred_check
    _
  $region47: #{equiv_hgnet_forward.1} parent=0 // pred_check_branch
    %43 = sbr.rel (0) target = $region49
  $region48: #{equiv_hgnet_forward.1} parent=0 // pred_region
    _
  $region49: #{equiv_hgnet_forward.1} parent=0 // pred_fallthru
    _
  // Predicated region
  $region50: #{equiv_hgnet_forward.1} parent=0 // pred_check
    _
  $region51: #{equiv_hgnet_forward.1} parent=0 // pred_check_branch
    %45 = sbr.rel (0) target = $region53
  $region52: #{equiv_hgnet_forward.1} parent=0 // pred_region
    _
  $region53: #{equiv_hgnet_forward.1} parent=0 // pred_fallthru
    _
  %v47 = vld [vmem:[%s3] sm:$0xff]
  %v48 = vld [vmem:[%s3 + $0x8] sm:$0xff]
  %v49 = vld [vmem:[%s3 + $0x10] sm:$0xff]
  %v50 = vld [vmem:[%s3 + $0x18] sm:$0xff]
  %v51 = vld [vmem:[%s4] sm:$0xff]
  %v52 = vld [vmem:[%s4 + $0x8] sm:$0xff]
  %v53 = vld [vmem:[%s4 + $0x10] sm:$0xff]
  %v54 = vld [vmem:[%s4 + $0x18] sm:$0xff]
  %v55 = vlaneseq
  %v56 = vshrl.u32 %v55, 7
  %v57 = vadd.s32 %v56, 8
  %v58 = vadd.s32 %v56, 16
  %v59 = vadd.s32 %v56, 24
  %v60 = vadd.s32 %v56, 32
  %v61 = vadd.s32 %v56, 40
  %v62 = vadd.s32 %v56, 48
  %v63 = vadd.s32 %v56, 56
  %v64 = vadd.s32 %v56, 64
  %v65 = vadd.s32 %v56, 72
  %v66 = vadd.s32 %v56, 80
  %v67 = vadd.s32 %v56, 88
  %v68 = vadd.s32 %v56, 96
  %v69 = vadd.s32 %v56, 104
  %v70 = vadd.s32 %v56, 112
  %v71 = vadd.s32 %v56, 120
  %v72 = vadd.s32 %v56, 128
  %v73 = vadd.s32 %v56, 136
  %v74 = vadd.s32 %v56, 144
  %v75 = vadd.s32 %v56, 152
  %v76 = vand.u32 %v56, 1
  %v77 = vand.u32 %v57, 1
  %v78 = vand.u32 %v58, 1
  %v79 = vand.u32 %v59, 1
  %v80 = vand.u32 %v60, 1
  %v81 = vand.u32 %v61, 1
  %v82 = vand.u32 %v62, 1
  %v83 = vand.u32 %v63, 1
  %v84 = vand.u32 %v64, 1
  %v85 = vand.u32 %v65, 1
  %v86 = vand.u32 %v66, 1
  %v87 = vand.u32 %v67, 1
  %v88 = vand.u32 %v68, 1
  %v89 = vand.u32 %v69, 1
  %v90 = vand.u32 %v70, 1
  %v91 = vand.u32 %v71, 1
  %v92 = vand.u32 %v72, 1
  %v93 = vand.u32 %v73, 1
  %v94 = vand.u32 %v74, 1
  %v95 = vand.u32 %v75, 1
  %vm96 = vcmp.eq.s32.totalorder %v76, 0
  %vm97 = vcmp.eq.s32.totalorder %v77, 0
  %vm98 = vcmp.eq.s32.totalorder %v78, 0
  %vm99 = vcmp.eq.s32.totalorder %v79, 0
  %vm100 = vcmp.eq.s32.totalorder %v80, 0
  %vm101 = vcmp.eq.s32.totalorder %v81, 0
  %vm102 = vcmp.eq.s32.totalorder %v82, 0
  %vm103 = vcmp.eq.s32.totalorder %v83, 0
  %vm104 = vcmp.eq.s32.totalorder %v84, 0
  %vm105 = vcmp.eq.s32.totalorder %v85, 0
  %vm106 = vcmp.eq.s32.totalorder %v86, 0
  %vm107 = vcmp.eq.s32.totalorder %v87, 0
  %vm108 = vcmp.eq.s32.totalorder %v88, 0
  %vm109 = vcmp.eq.s32.totalorder %v89, 0
  %vm110 = vcmp.eq.s32.totalorder %v90, 0
  %vm111 = vcmp.eq.s32.totalorder %v91, 0
  %vm112 = vcmp.eq.s32.totalorder %v92, 0
  %vm113 = vcmp.eq.s32.totalorder %v93, 0
  %vm114 = vcmp.eq.s32.totalorder %v94, 0
  %vm115 = vcmp.eq.s32.totalorder %v95, 0
  %vm116 = vcmp.lt.s32.totalorder %v56, 140
  %vm117 = vcmp.lt.s32.totalorder %v57, 140
  %vm118 = vcmp.lt.s32.totalorder %v58, 140
  %vm119 = vcmp.lt.s32.totalorder %v59, 140
  %vm120 = vcmp.lt.s32.totalorder %v60, 140
  %vm121 = vcmp.lt.s32.totalorder %v61, 140
  %vm122 = vcmp.lt.s32.totalorder %v62, 140
  %vm123 = vcmp.lt.s32.totalorder %v63, 140
  %vm124 = vcmp.lt.s32.totalorder %v64, 140
  %vm125 = vcmp.lt.s32.totalorder %v65, 140
  %vm126 = vcmp.lt.s32.totalorder %v66, 140
  %vm127 = vcmp.lt.s32.totalorder %v67, 140
  %vm128 = vcmp.lt.s32.totalorder %v68, 140
  %vm129 = vcmp.lt.s32.totalorder %v69, 140
  %vm130 = vcmp.lt.s32.totalorder %v70, 140
  %vm131 = vcmp.lt.s32.totalorder %v71, 140
  %vm132 = vcmp.lt.s32.totalorder %v72, 140
  %vm133 = vcmp.lt.s32.totalorder %v73, 140
  %vm134 = vcmp.lt.s32.totalorder %v74, 140
  %vm135 = vcmp.lt.s32.totalorder %v75, 140
  %v136 = vld [vmem:[%s0] sm:$0xf]
  %v137 = vld [vmem:[%s0 + $0x4] sm:$0xf]
  %v138 = vld [vmem:[%s0 + $0x8] sm:$0xf]
  %v139 = vld [vmem:[%s0 + $0xc] sm:$0xf]
  %v140 = vld [vmem:[%s0 + $0x10] sm:$0xf]
  %v141 = vld [vmem:[%s0 + $0x14] sm:$0xf]
  %v142 = vld [vmem:[%s0 + $0x18] sm:$0xf]
  %v143 = vld [vmem:[%s0 + $0x1c] sm:$0xf]
  %v144 = vld [vmem:[%s0 + $0x20] sm:$0xf]
  %v145 = vld [vmem:[%s0 + $0x24] sm:$0xf]
  %v146 = vld [vmem:[%s0 + $0x28] sm:$0xf]
  %v147 = vld [vmem:[%s0 + $0x2c] sm:$0xf]
  %v148 = vld [vmem:[%s0 + $0x30] sm:$0xf]
  %v149 = vld [vmem:[%s0 + $0x34] sm:$0xf]
  %v150 = vld [vmem:[%s0 + $0x38] sm:$0xf]
  %v151 = vld [vmem:[%s0 + $0x3c] sm:$0xf]
  %v152 = vld [vmem:[%s0 + $0x40] sm:$0xf]
  %v153 = vld [vmem:[%s0 + $0x44] sm:$0xf]
  %v154 = vld [vmem:[%s0 + $0x48] sm:$0xf]
  %v155 = vld [vmem:[%s0 + $0x4c] sm:$0x3]
  %v156 = vld [vmem:[%s1] sm:$0x3]
  %v157 = vld [vmem:[%s2] sm:$0x1]
  %v159 = vperm.slane %v157, 0
  %v181 = vunpack.c.l.b16 %v136
  %v182 = vunpack.c.l.b16 %v137
  %v183 = vunpack.c.l.b16 %v138
  %v184 = vunpack.c.l.b16 %v139
  %v185 = vunpack.c.l.b16 %v140
  %v186 = vunpack.c.l.b16 %v141
  %v187 = vunpack.c.l.b16 %v142
  %v188 = vunpack.c.l.b16 %v143
  %v189 = vunpack.c.l.b16 %v144
  %v190 = vunpack.c.l.b16 %v145
  %v191 = vunpack.c.l.b16 %v146
  %v192 = vunpack.c.l.b16 %v147
  %v193 = vunpack.c.l.b16 %v148
  %v194 = vunpack.c.l.b16 %v149
  %v195 = vunpack.c.l.b16 %v150
  %v196 = vunpack.c.l.b16 %v151
  %v197 = vunpack.c.l.b16 %v152
  %v198 = vunpack.c.l.b16 %v153
  %v199 = vunpack.c.l.b16 %v154
  %v200 = vunpack.c.l.b16 %v155
  %v201 = vpack.c.b16 %v182, %v181
  %v202 = vpack.c.b16 %v184, %v183
  %v203 = vpack.c.b16 %v186, %v185
  %v204 = vpack.c.b16 %v188, %v187
  %v205 = vpack.c.b16 %v190, %v189
  %v206 = vpack.c.b16 %v192, %v191
  %v207 = vpack.c.b16 %v194, %v193
  %v208 = vpack.c.b16 %v196, %v195
  %v209 = vpack.c.b16 %v198, %v197
  %v210 = vpack.c.b16 %v200, %v199
  %vm211 = vcmask 31744
  %v213 = vsel %vm211, %v201, 0
  %v216 = vsel %vm211, %v202, 0
  %v219 = vsel %vm211, %v203, 0
  %v222 = vsel %vm211, %v204, 0
  %v225 = vsel %vm211, %v205, 0
  %v228 = vsel %vm211, %v206, 0
  %v231 = vsel %vm211, %v207, 0
  %v234 = vsel %vm211, %v208, 0
  %v237 = vsel %vm211, %v209, 0
  %v240 = vsel %vm211, %v210, 0
  %vm242 = vcmask 1041408
  %v244 = vsel %vm242, %v156, 0
  %246 = vmatpush.bf16.msra.mxu0 0
  %247 = vmatpush.bf16.msra.mxu0 0
  %248 = vmatpush.bf16.msra.mxu0 0
  %249 = vmatpush.bf16.msra.mxu0 0
  %250 = vmatpush.bf16.msra.mxu0 0
  %251 = vmatpush.bf16.msra.mxu0 0
  %252 = vmatpush.bf16.msra.mxu0 0
  %253 = vmatpush.bf16.msra.mxu0 %v244
  %254 = vmatmul.bf16.gmra.mxu0 %v213
  %v255 = vpop.f32.mrf.mxu0
  %v256 = vadd.f32 %v159, %v255
  %v257 = vpop.f32.mrf.mxu0
  %v258 = vadd.f32 %v159, %v257
  %259 = vmatmul.bf16.gmra.mxu0 %v216
  %v260 = vpop.f32.mrf.mxu0
  %v261 = vadd.f32 %v159, %v260
  %v262 = vpop.f32.mrf.mxu0
  %v263 = vadd.f32 %v159, %v262
  %264 = vmatmul.bf16.gmra.mxu0 %v219
  %v265 = vpop.f32.mrf.mxu0
  %v266 = vadd.f32 %v159, %v265
  %v267 = vpop.f32.mrf.mxu0
  %v268 = vadd.f32 %v159, %v267
  %269 = vmatmul.bf16.gmra.mxu0 %v222
  %v270 = vpop.f32.mrf.mxu0
  %v271 = vadd.f32 %v159, %v270
  %v272 = vpop.f32.mrf.mxu0
  %v273 = vadd.f32 %v159, %v272
  %274 = vmatmul.bf16.gmra.mxu0 %v225
  %v275 = vpop.f32.mrf.mxu0
  %v276 = vadd.f32 %v159, %v275
  %v277 = vpop.f32.mrf.mxu0
  %v278 = vadd.f32 %v159, %v277
  %279 = vmatmul.bf16.gmra.mxu0 %v228
  %v280 = vpop.f32.mrf.mxu0
  %v281 = vadd.f32 %v159, %v280
  %v282 = vpop.f32.mrf.mxu0
  %v283 = vadd.f32 %v159, %v282
  %284 = vmatmul.bf16.gmra.mxu0 %v231
  %v285 = vpop.f32.mrf.mxu0
  %v286 = vadd.f32 %v159, %v285
  %v287 = vpop.f32.mrf.mxu0
  %v288 = vadd.f32 %v159, %v287
  %289 = vmatmul.bf16.gmra.mxu0 %v234
  %v290 = vpop.f32.mrf.mxu0
  %v291 = vadd.f32 %v159, %v290
  %v292 = vpop.f32.mrf.mxu0
  %v293 = vadd.f32 %v159, %v292
  %294 = vmatmul.bf16.gmra.mxu0 %v237
  %v295 = vpop.f32.mrf.mxu0
  %v296 = vadd.f32 %v159, %v295
  %v297 = vpop.f32.mrf.mxu0
  %v298 = vadd.f32 %v159, %v297
  %299 = vmatmul.bf16.gmra.mxu0 %v240
  %v300 = vpop.f32.mrf.mxu0
  %v301 = vadd.f32 %v159, %v300
  %v302 = vpop.f32.mrf.mxu0
  %v303 = vadd.f32 %v159, %v302
  %304 = vdwg.mxu0
  %v305 = vpack.c.bf16 %v256, %v256
  %v306 = vpack.c.bf16 %v258, %v258
  %v307 = vpack.c.bf16 %v261, %v261
  %v308 = vpack.c.bf16 %v263, %v263
  %v309 = vpack.c.bf16 %v266, %v266
  %v310 = vpack.c.bf16 %v268, %v268
  %v311 = vpack.c.bf16 %v271, %v271
  %v312 = vpack.c.bf16 %v273, %v273
  %v313 = vpack.c.bf16 %v276, %v276
  %v314 = vpack.c.bf16 %v278, %v278
  %v315 = vpack.c.bf16 %v281, %v281
  %v316 = vpack.c.bf16 %v283, %v283
  %v317 = vpack.c.bf16 %v286, %v286
  %v318 = vpack.c.bf16 %v288, %v288
  %v319 = vpack.c.bf16 %v291, %v291
  %v320 = vpack.c.bf16 %v293, %v293
  %v321 = vpack.c.bf16 %v296, %v296
  %v322 = vpack.c.bf16 %v298, %v298
  %v323 = vpack.c.bf16 %v301, %v301
  %v324 = vpack.c.bf16 %v303, %v303
  %vm345 = vcmask 1046528
  %v346 = vrot.slane %v256, 1
  %v347 = vrot.slane %v258, 1
  %v348 = vsel %vm345, %v346, %v347
  %v349 = vrot.slane %v261, 1
  %v350 = vsel %vm345, %v347, %v349
  %v351 = vrot.slane %v263, 1
  %v352 = vsel %vm345, %v349, %v351
  %v353 = vrot.slane %v266, 1
  %v354 = vsel %vm345, %v351, %v353
  %v355 = vrot.slane %v268, 1
  %v356 = vsel %vm345, %v353, %v355
  %v357 = vrot.slane %v271, 1
  %v358 = vsel %vm345, %v355, %v357
  %v359 = vrot.slane %v273, 1
  %v360 = vsel %vm345, %v357, %v359
  %v361 = vrot.slane %v276, 1
  %v362 = vsel %vm345, %v359, %v361
  %v363 = vrot.slane %v278, 1
  %v364 = vsel %vm345, %v361, %v363
  %v365 = vrot.slane %v281, 1
  %v366 = vsel %vm345, %v363, %v365
  %v367 = vrot.slane %v283, 1
  %v368 = vsel %vm345, %v365, %v367
  %v369 = vrot.slane %v286, 1
  %v370 = vsel %vm345, %v367, %v369
  %v371 = vrot.slane %v288, 1
  %v372 = vsel %vm345, %v369, %v371
  %v373 = vrot.slane %v291, 1
  %v374 = vsel %vm345, %v371, %v373
  %v375 = vrot.slane %v293, 1
  %v376 = vsel %vm345, %v373, %v375
  %v377 = vrot.slane %v296, 1
  %v378 = vsel %vm345, %v375, %v377
  %v379 = vrot.slane %v298, 1
  %v380 = vsel %vm345, %v377, %v379
  %v381 = vrot.slane %v301, 1
  %v382 = vsel %vm345, %v379, %v381
  %v383 = vrot.slane %v303, 1
  %v384 = vsel %vm345, %v381, %v383
  %v405 = vrot.slane %v256, 5
  %vm407 = vcmask 1042432
  %v408 = vsel %vm407, %v383, %v405
  %v409 = vrot.slane %v303, 3
  %vm411 = vcmask 1040384
  %v412 = vrot.slane %v256, 7
  %v413 = vrot.slane %v258, 7
  %v414 = vsel %vm411, %v412, %v413
  %v415 = vrot.slane %v261, 7
  %v416 = vsel %vm411, %v413, %v415
  %v417 = vrot.slane %v263, 7
  %v418 = vsel %vm411, %v415, %v417
  %v419 = vrot.slane %v266, 7
  %v420 = vsel %vm411, %v417, %v419
  %v421 = vrot.slane %v268, 7
  %v422 = vsel %vm411, %v419, %v421
  %v423 = vrot.slane %v271, 7
  %v424 = vsel %vm411, %v421, %v423
  %v425 = vrot.slane %v273, 7
  %v426 = vsel %vm411, %v423, %v425
  %v427 = vrot.slane %v276, 7
  %v428 = vsel %vm411, %v425, %v427
  %v429 = vrot.slane %v278, 7
  %v430 = vsel %vm411, %v427, %v429
  %v431 = vrot.slane %v281, 7
  %v432 = vsel %vm411, %v429, %v431
  %v433 = vrot.slane %v283, 7
  %v434 = vsel %vm411, %v431, %v433
  %v435 = vrot.slane %v286, 7
  %v436 = vsel %vm411, %v433, %v435
  %v437 = vrot.slane %v288, 7
  %v438 = vsel %vm411, %v435, %v437
  %v439 = vrot.slane %v291, 7
  %v440 = vsel %vm411, %v437, %v439
  %v441 = vrot.slane %v293, 7
  %v442 = vsel %vm411, %v439, %v441
  %v443 = vrot.slane %v296, 7
  %v444 = vsel %vm411, %v441, %v443
  %v445 = vrot.slane %v298, 7
  %v446 = vsel %vm411, %v443, %v445
  %v447 = vrot.slane %v301, 7
  %v448 = vsel %vm411, %v445, %v447
  %v449 = vrot.slane %v303, 7
  %v450 = vsel %vm411, %v447, %v449
  %v471 = vsel %vm411, %v409, %v412
  %v472 = vsel %vm96, 1, 0
  %v473 = vsel %vm97, 1, 0
  %v474 = vsel %vm98, 1, 0
  %v475 = vsel %vm99, 1, 0
  %v476 = vsel %vm100, 1, 0
  %v477 = vsel %vm101, 1, 0
  %v478 = vsel %vm102, 1, 0
  %v479 = vsel %vm103, 1, 0
  %v480 = vsel %vm104, 1, 0
  %v481 = vsel %vm105, 1, 0
  %v482 = vsel %vm106, 1, 0
  %v483 = vsel %vm107, 1, 0
  %v484 = vsel %vm108, 1, 0
  %v485 = vsel %vm109, 1, 0
  %v486 = vsel %vm110, 1, 0
  %v487 = vsel %vm111, 1, 0
  %v488 = vsel %vm112, 1, 0
  %v489 = vsel %vm113, 1, 0
  %v490 = vsel %vm114, 1, 0
  %v491 = vsel %vm115, 1, 0
  %vm492 = vcmp.eq.s32.totalorder %v472, 1
  %vm493 = vcmp.eq.s32.totalorder %v473, 1
  %vm494 = vcmp.eq.s32.totalorder %v474, 1
  %vm495 = vcmp.eq.s32.totalorder %v475, 1
  %vm496 = vcmp.eq.s32.totalorder %v476, 1
  %vm497 = vcmp.eq.s32.totalorder %v477, 1
  %vm498 = vcmp.eq.s32.totalorder %v478, 1
  %vm499 = vcmp.eq.s32.totalorder %v479, 1
  %vm500 = vcmp.eq.s32.totalorder %v480, 1
  %vm501 = vcmp.eq.s32.totalorder %v481, 1
  %vm502 = vcmp.eq.s32.totalorder %v482, 1
  %vm503 = vcmp.eq.s32.totalorder %v483, 1
  %vm504 = vcmp.eq.s32.totalorder %v484, 1
  %vm505 = vcmp.eq.s32.totalorder %v485, 1
  %vm506 = vcmp.eq.s32.totalorder %v486, 1
  %vm507 = vcmp.eq.s32.totalorder %v487, 1
  %vm508 = vcmp.eq.s32.totalorder %v488, 1
  %vm509 = vcmp.eq.s32.totalorder %v489, 1
  %vm510 = vcmp.eq.s32.totalorder %v490, 1
  %vm511 = vcmp.eq.s32.totalorder %v491, 1
  %v512 = vsel %vm492, %v348, %v471
  %v513 = vsel %vm493, %v350, %v414
  %v514 = vsel %vm494, %v352, %v416
  %v515 = vsel %vm495, %v354, %v418
  %v516 = vsel %vm496, %v356, %v420
  %v517 = vsel %vm497, %v358, %v422
  %v518 = vsel %vm498, %v360, %v424
  %v519 = vsel %vm499, %v362, %v426
  %v520 = vsel %vm500, %v364, %v428
  %v521 = vsel %vm501, %v366, %v430
  %v522 = vsel %vm502, %v368, %v432
  %v523 = vsel %vm503, %v370, %v434
  %v524 = vsel %vm504, %v372, %v436
  %v525 = vsel %vm505, %v374, %v438
  %v526 = vsel %vm506, %v376, %v440
  %v527 = vsel %vm507, %v378, %v442
  %v528 = vsel %vm508, %v380, %v444
  %v529 = vsel %vm509, %v382, %v446
  %v530 = vsel %vm510, %v384, %v448
  %v531 = vsel %vm511, %v408, %v450
  %v532 = vsel %vm116, 1, 0
  %v533 = vsel %vm117, 1, 0
  %v534 = vsel %vm118, 1, 0
  %v535 = vsel %vm119, 1, 0
  %v536 = vsel %vm120, 1, 0
  %v537 = vsel %vm121, 1, 0
  %v538 = vsel %vm122, 1, 0
  %v539 = vsel %vm123, 1, 0
  %v540 = vsel %vm124, 1, 0
  %v541 = vsel %vm125, 1, 0
  %v542 = vsel %vm126, 1, 0
  %v543 = vsel %vm127, 1, 0
  %v544 = vsel %vm128, 1, 0
  %v545 = vsel %vm129, 1, 0
  %v546 = vsel %vm130, 1, 0
  %v547 = vsel %vm131, 1, 0
  %v548 = vsel %vm132, 1, 0
  %v549 = vsel %vm133, 1, 0
  %v550 = vsel %vm134, 1, 0
  %v551 = vsel %vm135, 1, 0
  %vm552 = vcmp.eq.s32.totalorder %v532, 1
  %vm553 = vcmp.eq.s32.totalorder %v533, 1
  %vm554 = vcmp.eq.s32.totalorder %v534, 1
  %vm555 = vcmp.eq.s32.totalorder %v535, 1
  %vm556 = vcmp.eq.s32.totalorder %v536, 1
  %vm557 = vcmp.eq.s32.totalorder %v537, 1
  %vm558 = vcmp.eq.s32.totalorder %v538, 1
  %vm559 = vcmp.eq.s32.totalorder %v539, 1
  %vm560 = vcmp.eq.s32.totalorder %v540, 1
  %vm561 = vcmp.eq.s32.totalorder %v541, 1
  %vm562 = vcmp.eq.s32.totalorder %v542, 1
  %vm563 = vcmp.eq.s32.totalorder %v543, 1
  %vm564 = vcmp.eq.s32.totalorder %v544, 1
  %vm565 = vcmp.eq.s32.totalorder %v545, 1
  %vm566 = vcmp.eq.s32.totalorder %v546, 1
  %vm567 = vcmp.eq.s32.totalorder %v547, 1
  %vm568 = vcmp.eq.s32.totalorder %v548, 1
  %vm569 = vcmp.eq.s32.totalorder %v549, 1
  %vm570 = vcmp.eq.s32.totalorder %v550, 1
  %vm571 = vcmp.eq.s32.totalorder %v551, 1
  %v572 = vsel %vm552, %v512, %v256
  %v573 = vsel %vm553, %v513, %v258
  %v574 = vsel %vm554, %v514, %v261
  %v575 = vsel %vm555, %v515, %v263
  %v576 = vsel %vm556, %v516, %v266
  %v577 = vsel %vm557, %v517, %v268
  %v578 = vsel %vm558, %v518, %v271
  %v579 = vsel %vm559, %v519, %v273
  %v580 = vsel %vm560, %v520, %v276
  %v581 = vsel %vm561, %v521, %v278
  %v582 = vsel %vm562, %v522, %v281
  %v583 = vsel %vm563, %v523, %v283
  %v584 = vsel %vm564, %v524, %v286
  %v585 = vsel %vm565, %v525, %v288
  %v586 = vsel %vm566, %v526, %v291
  %v587 = vsel %vm567, %v527, %v293
  %v588 = vsel %vm568, %v528, %v296
  %v589 = vsel %vm569, %v529, %v298
  %v590 = vsel %vm570, %v530, %v301
  %v591 = vsel %vm571, %v531, %v303
  %v592 = vpack.c.bf16 %v572, %v572
  %v593 = vpack.c.bf16 %v573, %v573
  %v594 = vpack.c.bf16 %v574, %v574
  %v595 = vpack.c.bf16 %v575, %v575
  %v596 = vpack.c.bf16 %v576, %v576
  %v597 = vpack.c.bf16 %v577, %v577
  %v598 = vpack.c.bf16 %v578, %v578
  %v599 = vpack.c.bf16 %v579, %v579
  %v600 = vpack.c.bf16 %v580, %v580
  %v601 = vpack.c.bf16 %v581, %v581
  %v602 = vpack.c.bf16 %v582, %v582
  %v603 = vpack.c.bf16 %v583, %v583
  %v604 = vpack.c.bf16 %v584, %v584
  %v605 = vpack.c.bf16 %v585, %v585
  %v606 = vpack.c.bf16 %v586, %v586
  %v607 = vpack.c.bf16 %v587, %v587
  %v608 = vpack.c.bf16 %v588, %v588
  %v609 = vpack.c.bf16 %v589, %v589
  %v610 = vpack.c.bf16 %v590, %v590
  %v611 = vpack.c.bf16 %v591, %v591
  %v632 = vunpack.c.l.b16 %v305
  %v633 = vunpack.c.l.b16 %v306
  %v634 = vunpack.c.l.b16 %v307
  %v635 = vunpack.c.l.b16 %v308
  %v636 = vunpack.c.l.b16 %v309
  %v637 = vunpack.c.l.b16 %v310
  %v638 = vunpack.c.l.b16 %v311
  %v639 = vunpack.c.l.b16 %v312
  %v640 = vunpack.c.l.b16 %v313
  %v641 = vunpack.c.l.b16 %v314
  %v642 = vunpack.c.l.b16 %v315
  %v643 = vunpack.c.l.b16 %v316
  %v644 = vunpack.c.l.b16 %v317
  %v645 = vunpack.c.l.b16 %v318
  %v646 = vunpack.c.l.b16 %v319
  %v647 = vunpack.c.l.b16 %v320
  %v648 = vunpack.c.l.b16 %v321
  %v649 = vunpack.c.l.b16 %v322
  %v650 = vunpack.c.l.b16 %v323
  %v651 = vunpack.c.l.b16 %v324
  %v652 = vpack.c.b16 %v633, %v632
  %v653 = vpack.c.b16 %v635, %v634
  %v654 = vpack.c.b16 %v637, %v636
  %v655 = vpack.c.b16 %v639, %v638
  %v656 = vpack.c.b16 %v641, %v640
  %v657 = vpack.c.b16 %v643, %v642
  %v658 = vpack.c.b16 %v645, %v644
  %v659 = vpack.c.b16 %v647, %v646
  %v660 = vpack.c.b16 %v649, %v648
  %v661 = vpack.c.b16 %v651, %v650
  %v682 = vunpack.c.l.b16 %v592
  %v683 = vunpack.c.l.b16 %v593
  %v684 = vunpack.c.l.b16 %v594
  %v685 = vunpack.c.l.b16 %v595
  %v686 = vunpack.c.l.b16 %v596
  %v687 = vunpack.c.l.b16 %v597
  %v688 = vunpack.c.l.b16 %v598
  %v689 = vunpack.c.l.b16 %v599
  %v690 = vunpack.c.l.b16 %v600
  %v691 = vunpack.c.l.b16 %v601
  %v692 = vunpack.c.l.b16 %v602
  %v693 = vunpack.c.l.b16 %v603
  %v694 = vunpack.c.l.b16 %v604
  %v695 = vunpack.c.l.b16 %v605
  %v696 = vunpack.c.l.b16 %v606
  %v697 = vunpack.c.l.b16 %v607
  %v698 = vunpack.c.l.b16 %v608
  %v699 = vunpack.c.l.b16 %v609
  %v700 = vunpack.c.l.b16 %v610
  %v701 = vunpack.c.l.b16 %v611
  %v702 = vpack.c.b16 %v683, %v682
  %v703 = vpack.c.b16 %v685, %v684
  %v704 = vpack.c.b16 %v687, %v686
  %v705 = vpack.c.b16 %v689, %v688
  %v706 = vpack.c.b16 %v691, %v690
  %v707 = vpack.c.b16 %v693, %v692
  %v708 = vpack.c.b16 %v695, %v694
  %v709 = vpack.c.b16 %v697, %v696
  %v710 = vpack.c.b16 %v699, %v698
  %v711 = vpack.c.b16 %v701, %v700
  %712 = vrot.lane.b32.xlu0 %v702, 32
  %v713 = vpop.permute.xlu0 %712
  %714 = vrot.lane.b32.xlu0 %v703, 32
  %v715 = vpop.permute.xlu0 %714
  %716 = vrot.lane.b32.xlu0 %v704, 32
  %v717 = vpop.permute.xlu0 %716
  %718 = vrot.lane.b32.xlu0 %v705, 32
  %v719 = vpop.permute.xlu0 %718
  %720 = vrot.lane.b32.xlu0 %v706, 32
  %v721 = vpop.permute.xlu0 %720
  %722 = vrot.lane.b32.xlu0 %v707, 32
  %v723 = vpop.permute.xlu0 %722
  %724 = vrot.lane.b32.xlu0 %v708, 32
  %v725 = vpop.permute.xlu0 %724
  %726 = vrot.lane.b32.xlu0 %v709, 32
  %v727 = vpop.permute.xlu0 %726
  %728 = vrot.lane.b32.xlu0 %v710, 32
  %v729 = vpop.permute.xlu0 %728
  %730 = vrot.lane.b32.xlu0 %v711, 32
  %v731 = vpop.permute.xlu0 %730
  %vm732 = vcmask 261120
  %v735 = vsel %vm732, %v652, %v713
  %v738 = vsel %vm732, %v653, %v715
  %v741 = vsel %vm732, %v654, %v717
  %v744 = vsel %vm732, %v655, %v719
  %v747 = vsel %vm732, %v656, %v721
  %v750 = vsel %vm732, %v657, %v723
  %v753 = vsel %vm732, %v658, %v725
  %v756 = vsel %vm732, %v659, %v727
  %v759 = vsel %vm732, %v660, %v729
  %v762 = vsel %vm732, %v661, %v731
  %v763 = vld [vmem:[%s5] sm:$0xf]
  %v764 = vld [vmem:[%s5 + $0x4] sm:$0xf]
  %v765 = vld [vmem:[%s5 + $0x8] sm:$0xf]
  %v766 = vld [vmem:[%s5 + $0xc] sm:$0xf]
  %v767 = vld [vmem:[%s5 + $0x10] sm:$0xf]
  %v768 = vld [vmem:[%s5 + $0x14] sm:$0xf]
  %v769 = vld [vmem:[%s5 + $0x18] sm:$0xf]
  %v770 = vld [vmem:[%s5 + $0x1c] sm:$0xf]
  %v775 = vunpack.c.l.b16 %v47
  %v776 = vunpack.c.h.b16 %v47
  %v777 = vunpack.c.l.b16 %v48
  %v778 = vunpack.c.h.b16 %v48
  %v779 = vunpack.c.l.b16 %v49
  %v780 = vunpack.c.h.b16 %v49
  %v781 = vunpack.c.l.b16 %v50
  %v782 = vunpack.c.h.b16 %v50
  %v783 = vpack.c.b16 %v777, %v775
  %v784 = vpack.c.b16 %v778, %v776
  %v785 = vpack.c.b16 %v781, %v779
  %v786 = vpack.c.b16 %v782, %v780
  %vm798 = vcmask 228352
  %v800 = vsel %vm798, %v784, 0
  %v803 = vsel %vm798, %v786, 0
  %vm805 = vcmask 1045504
  %v806 = vsel %vm805, %v661, 0
  %808 = vmatpush.bf16.msra.mxu0 %v659
  %809 = vmatpush.bf16.msra.mxu0 %v658
  %810 = vmatpush.bf16.msra.mxu0 %v657
  %811 = vmatpush.bf16.msra.mxu0 %v656
  %812 = vmatpush.bf16.msra.mxu0 %v655
  %813 = vmatpush.bf16.msra.mxu0 %v654
  %814 = vmatpush.bf16.msra.mxu0 %v653
  %815 = vmatpush.bf16.msra.mxu0 %v652
  %816 = vmatmul.bf16.gmra.mxu0 %v783
  %v817 = vpop.f32.mrf.mxu0
  %v818 = vadd.f32 0.0, %v817
  %v819 = vpop.f32.mrf.mxu0
  %v820 = vadd.f32 0.0, %v819
  %821 = vmatmul.bf16.gmra.mxu0 %v785
  %v822 = vpop.f32.mrf.mxu0
  %v823 = vadd.f32 0.0, %v822
  %v824 = vpop.f32.mrf.mxu0
  %v825 = vadd.f32 0.0, %v824
  %826 = vdwg.mxu0
  %827 = vmatpush.bf16.msra.mxu0 0
  %828 = vmatpush.bf16.msra.mxu0 0
  %829 = vmatpush.bf16.msra.mxu0 0
  %830 = vmatpush.bf16.msra.mxu0 0
  %831 = vmatpush.bf16.msra.mxu0 0
  %832 = vmatpush.bf16.msra.mxu0 0
  %833 = vmatpush.bf16.msra.mxu0 %v806
  %834 = vmatpush.bf16.msra.mxu0 %v660
  %835 = vmatmul.bf16.gmra.mxu0 %v800
  %v836 = vpop.f32.mrf.mxu0
  %v837 = vadd.f32 %v818, %v836
  %v838 = vpop.f32.mrf.mxu0
  %v839 = vadd.f32 %v820, %v838
  %840 = vmatmul.bf16.gmra.mxu0 %v803
  %v841 = vpop.f32.mrf.mxu0
  %v842 = vadd.f32 %v823, %v841
  %v843 = vpop.f32.mrf.mxu0
  %v844 = vadd.f32 %v825, %v843
  %845 = vdwg.mxu0
  %847 = vset.pattern.permute.xlu0 0
  %848 = vperm.xlu0 %847, %v51
  %v849 = vpop.permute.xlu0 %848
  %852 = vset.pattern.permute.xlu0 0
  %853 = vperm.xlu0 %852, %v52
  %v854 = vpop.permute.xlu0 %853
  %857 = vset.pattern.permute.xlu0 0
  %858 = vperm.xlu0 %857, %v53
  %v859 = vpop.permute.xlu0 %858
  %862 = vset.pattern.permute.xlu0 0
  %863 = vperm.xlu0 %862, %v54
  %v864 = vpop.permute.xlu0 %863
  %v866 = vmul.f32 %v837, %v849
  %v867 = vmul.f32 %v839, %v854
  %v868 = vmul.f32 %v842, %v859
  %v869 = vmul.f32 %v844, %v864
  %v870 = vsel %vm732, %v256, 0.0
  %v871 = vsel %vm732, %v258, 0.0
  %v872 = vadd.f32 %v870, %v871
  %v873 = vsel %vm732, %v261, 0.0
  %v874 = vadd.f32 %v872, %v873
  %v875 = vsel %vm732, %v263, 0.0
  %v876 = vadd.f32 %v874, %v875
  %v877 = vsel %vm732, %v266, 0.0
  %v878 = vadd.f32 %v876, %v877
  %v879 = vsel %vm732, %v268, 0.0
  %v880 = vadd.f32 %v878, %v879
  %v881 = vsel %vm732, %v271, 0.0
  %v882 = vadd.f32 %v880, %v881
  %v883 = vsel %vm732, %v273, 0.0
  %v884 = vadd.f32 %v882, %v883
  %v885 = vsel %vm732, %v276, 0.0
  %v886 = vadd.f32 %v884, %v885
  %v887 = vsel %vm732, %v278, 0.0
  %v888 = vadd.f32 %v886, %v887
  %v889 = vsel %vm732, %v281, 0.0
  %v890 = vadd.f32 %v888, %v889
  %v891 = vsel %vm732, %v283, 0.0
  %v892 = vadd.f32 %v890, %v891
  %v893 = vsel %vm732, %v286, 0.0
  %v894 = vadd.f32 %v892, %v893
  %v895 = vsel %vm732, %v288, 0.0
  %v896 = vadd.f32 %v894, %v895
  %v897 = vsel %vm732, %v291, 0.0
  %v898 = vadd.f32 %v896, %v897
  %v899 = vsel %vm732, %v293, 0.0
  %v900 = vadd.f32 %v898, %v899
  %v901 = vsel %vm732, %v296, 0.0
  %v902 = vadd.f32 %v900, %v901
  %v903 = vsel %vm732, %v298, 0.0
  %v904 = vadd.f32 %v902, %v903
  %v905 = vsel %vm732, %v301, 0.0
  %v906 = vadd.f32 %v904, %v905
  %vm907 = vcmask 257024
  %v908 = vsel %vm907, %v303, 0.0
  %v909 = vadd.f32 %v906, %v908
  %v910 = vrot.slane %v909, 4
  %v911 = vadd.f32 %v909, %v910
  %v912 = vrot.slane %v911, 2
  %v913 = vadd.f32 %v911, %v912
  %v914 = vrot.slane %v913, 1
  %v915 = vadd.f32 %v913, %v914
  %v916 = vrcp.pop 156.0
  %v917 = vmul.f32 156.0, %v916
  %v918 = vsub.f32 1.0, %v917
  %v919 = vmul.f32 %v916, %v918
  %v920 = vadd.f32 %v916, %v919
  %vm921 = vweird.f32 %v916
  %v922 = vsel %vm921, %v916, %v920
  %v923 = vmul.f32 %v915, %v922
  %926 = vrot.lane.b32.xlu0 %v868, 32
  %v927 = vpop.permute.xlu0 %926
  %928 = vrot.lane.b32.xlu0 %v869, 32
  %v929 = vpop.permute.xlu0 %928
  %v932 = vsel %vm732, %v866, %v927
  %v933 = vsel %vm732, %v867, %v929
  %v934 = vpack.c.bf16 %v933, %v932
  %v935 = vld [vmem:[%s6] sm:$0xf]
  %v936 = vld [vmem:[%s6 + $0x4] sm:$0xf]
  %v937 = vld [vmem:[%s6 + $0x8] sm:$0xf]
  %v938 = vld [vmem:[%s6 + $0xc] sm:$0xf]
  %v939 = vld [vmem:[%s6 + $0x10] sm:$0xf]
  %v940 = vld [vmem:[%s6 + $0x14] sm:$0xf]
  %v941 = vld [vmem:[%s6 + $0x18] sm:$0xf]
  %v942 = vld [vmem:[%s6 + $0x1c] sm:$0xf]
  %v951 = vunpack.c.l.b16 %v935
  %v952 = vunpack.c.l.b16 %v936
  %v953 = vunpack.c.l.b16 %v937
  %v954 = vunpack.c.l.b16 %v938
  %v955 = vunpack.c.l.b16 %v939
  %v956 = vunpack.c.l.b16 %v940
  %v957 = vunpack.c.l.b16 %v941
  %v958 = vunpack.c.l.b16 %v942
  %v959 = vpack.c.b16 %v952, %v951
  %v960 = vpack.c.b16 %v954, %v953
  %v961 = vpack.c.b16 %v956, %v955
  %v962 = vpack.c.b16 %v958, %v957
  %vm967 = vcmask 523264
  %v969 = vsel %vm967, %v934, 0
  %971 = vmatpush.bf16.msra.mxu0 0
  %972 = vmatpush.bf16.msra.mxu0 0
  %973 = vmatpush.bf16.msra.mxu0 0
  %974 = vmatpush.bf16.msra.mxu0 0
  %975 = vmatpush.bf16.msra.mxu0 %v962
  %976 = vmatpush.bf16.msra.mxu0 %v961
  %977 = vmatpush.bf16.msra.mxu0 %v960
  %978 = vmatpush.bf16.msra.mxu0 %v959
  %979 = vmatmul.bf16.gmra.mxu0 %v969
  %v980 = vpop.f32.mrf.mxu0
  %v981 = vadd.f32 0.0, %v980
  %v982 = vpop.f32.mrf.mxu0
  %v983 = vadd.f32 0.0, %v982
  %984 = vdwg.mxu0
  %987 = vrot.lane.b32.xlu0 %v981, 64
  %v988 = vpop.permute.xlu0 %987
  %989 = vrot.lane.b32.xlu0 %v983, 64
  %v990 = vpop.permute.xlu0 %989
  %v993 = vpack.c.bf16 %v983, %v981
  %v994 = vpack.c.bf16 %v990, %v988
  %v995 = vpack.c.bf16 %v923, %v923
  %v996 = vld [vmem:[%s7] sm:$0xf]
  %v997 = vld [vmem:[%s7 + $0x4] sm:$0xf]
  %v998 = vld [vmem:[%s7 + $0x8] sm:$0xf]
  %v999 = vld [vmem:[%s7 + $0xc] sm:$0xf]
  %v1004 = vunpack.c.l.b16 %v996
  %v1005 = vunpack.c.l.b16 %v997
  %v1006 = vunpack.c.l.b16 %v998
  %v1007 = vunpack.c.l.b16 %v999
  %v1008 = vpack.c.b16 %v1005, %v1004
  %v1009 = vpack.c.b16 %v1007, %v1006
  %v1013 = vsel %vm732, %v995, 0
  %1015 = vmatpush.bf16.msra.mxu0 0
  %1016 = vmatpush.bf16.msra.mxu0 0
  %1017 = vmatpush.bf16.msra.mxu0 0
  %1018 = vmatpush.bf16.msra.mxu0 0
  %1019 = vmatpush.bf16.msra.mxu0 0
  %1020 = vmatpush.bf16.msra.mxu0 0
  %1021 = vmatpush.bf16.msra.mxu0 %v1009
  %1022 = vmatpush.bf16.msra.mxu0 %v1008
  %1023 = vmatmul.bf16.gmra.mxu0 %v1013
  %v1024 = vpop.f32.mrf.mxu0
  %v1025 = vadd.f32 0.0, %v1024
  %v1026 = vpop.f32.mrf.mxu0
  %1027 = vdwg.mxu0
  %1030 = vxpose.binary.xlu0.c.b16.start [1/16] %v784, %v783, 128
  %1031 = vxpose.binary.xlu0.c.b16.cont [2/16] %v786, %v785, 128
  %1032 = vxpose.binary.xlu0.c.b16.cont [3/16] 0, 0, 128
  %1033 = vxpose.binary.xlu0.c.b16.cont [4/16] 0, 0, 128
  %1034 = vxpose.binary.xlu0.c.b16.cont [5/16] 0, 0, 128
  %1035 = vxpose.binary.xlu0.c.b16.cont [6/16] 0, 0, 128
  %1036 = vxpose.binary.xlu0.c.b16.cont [7/16] 0, 0, 128
  %1037 = vxpose.binary.xlu0.c.b16.end [8/16] 0, 0, 128
  %v1038 = vpop.trf.xlu0
  %v1039 = vpop.trf.xlu0
  %v1040 = vpop.trf.xlu0
  %v1041 = vpop.trf.xlu0
  %v1042 = vpop.trf.xlu0
  %v1043 = vpop.trf.xlu0
  %v1044 = vpop.trf.xlu0
  %v1045 = vpop.trf.xlu0
  %v1046 = vpop.trf.xlu0
  %v1047 = vpop.trf.xlu0
  %v1048 = vpop.trf.xlu0
  %v1049 = vpop.trf.xlu0
  %v1050 = vpop.trf.xlu0
  %v1051 = vpop.trf.xlu0
  %v1052 = vpop.trf.xlu0
  %v1053 = vpop.trf.xlu0
  %v1055 = vsel %vm732, %v1038, 0
  %v1058 = vsel %vm732, %v1040, 0
  %v1061 = vsel %vm732, %v1042, 0
  %v1064 = vsel %vm732, %v1044, 0
  %v1067 = vsel %vm732, %v1046, 0
  %v1070 = vsel %vm732, %v1048, 0
  %v1073 = vsel %vm732, %v1050, 0
  %v1076 = vsel %vm732, %v1052, 0
  %v1079 = vsel %vm732, %v1039, 0
  %v1082 = vsel %vm732, %v1041, 0
  %1084 = vmatpush.bf16.msra.mxu0 0
  %1085 = vmatpush.bf16.msra.mxu0 0
  %1086 = vmatpush.bf16.msra.mxu0 0
  %1087 = vmatpush.bf16.msra.mxu0 0
  %1088 = vmatpush.bf16.msra.mxu0 0
  %1089 = vmatpush.bf16.msra.mxu0 0
  %1090 = vmatpush.bf16.msra.mxu0 %v994
  %1091 = vmatpush.bf16.msra.mxu0 %v993
  %1092 = vmatmul.bf16.gmra.mxu0 %v1055
  %v1093 = vpop.f32.mrf.mxu0
  %v1094 = vadd.f32 0.0, %v1093
  %v1095 = vpop.f32.mrf.mxu0
  %v1096 = vadd.f32 0.0, %v1095
  %1097 = vmatmul.bf16.gmra.mxu0 %v1058
  %v1098 = vpop.f32.mrf.mxu0
  %v1099 = vadd.f32 0.0, %v1098
  %v1100 = vpop.f32.mrf.mxu0
  %v1101 = vadd.f32 0.0, %v1100
  %1102 = vmatmul.bf16.gmra.mxu0 %v1061
  %v1103 = vpop.f32.mrf.mxu0
  %v1104 = vadd.f32 0.0, %v1103
  %v1105 = vpop.f32.mrf.mxu0
  %v1106 = vadd.f32 0.0, %v1105
  %1107 = vmatmul.bf16.gmra.mxu0 %v1064
  %v1108 = vpop.f32.mrf.mxu0
  %v1109 = vadd.f32 0.0, %v1108
  %v1110 = vpop.f32.mrf.mxu0
  %v1111 = vadd.f32 0.0, %v1110
  %1112 = vmatmul.bf16.gmra.mxu0 %v1067
  %v1113 = vpop.f32.mrf.mxu0
  %v1114 = vadd.f32 0.0, %v1113
  %v1115 = vpop.f32.mrf.mxu0
  %v1116 = vadd.f32 0.0, %v1115
  %1117 = vmatmul.bf16.gmra.mxu0 %v1070
  %v1118 = vpop.f32.mrf.mxu0
  %v1119 = vadd.f32 0.0, %v1118
  %v1120 = vpop.f32.mrf.mxu0
  %v1121 = vadd.f32 0.0, %v1120
  %1122 = vmatmul.bf16.gmra.mxu0 %v1073
  %v1123 = vpop.f32.mrf.mxu0
  %v1124 = vadd.f32 0.0, %v1123
  %v1125 = vpop.f32.mrf.mxu0
  %v1126 = vadd.f32 0.0, %v1125
  %1127 = vmatmul.bf16.gmra.mxu0 %v1076
  %v1128 = vpop.f32.mrf.mxu0
  %v1129 = vadd.f32 0.0, %v1128
  %v1130 = vpop.f32.mrf.mxu0
  %v1131 = vadd.f32 0.0, %v1130
  %1132 = vmatmul.bf16.gmra.mxu0 %v1079
  %v1133 = vpop.f32.mrf.mxu0
  %v1134 = vadd.f32 0.0, %v1133
  %v1135 = vpop.f32.mrf.mxu0
  %v1136 = vadd.f32 0.0, %v1135
  %1137 = vmatmul.bf16.gmra.mxu0 %v1082
  %v1138 = vpop.f32.mrf.mxu0
  %v1139 = vadd.f32 0.0, %v1138
  %v1140 = vpop.f32.mrf.mxu0
  %v1141 = vadd.f32 0.0, %v1140
  %1142 = vdwg.mxu0
  %v1151 = vunpack.c.l.b16 %v763
  %v1152 = vunpack.c.l.b16 %v764
  %v1153 = vunpack.c.l.b16 %v765
  %v1154 = vunpack.c.l.b16 %v766
  %v1155 = vunpack.c.l.b16 %v767
  %v1156 = vunpack.c.l.b16 %v768
  %v1157 = vunpack.c.l.b16 %v769
  %v1158 = vunpack.c.l.b16 %v770
  %v1159 = vpack.c.b16 %v1152, %v1151
  %v1160 = vpack.c.b16 %v1154, %v1153
  %v1161 = vpack.c.b16 %v1156, %v1155
  %v1162 = vpack.c.b16 %v1158, %v1157
  %v1167 = vsel %vm967, %v735, 0
  %v1169 = vsel %vm967, %v738, 0
  %v1171 = vsel %vm967, %v741, 0
  %v1173 = vsel %vm967, %v744, 0
  %v1175 = vsel %vm967, %v747, 0
  %v1177 = vsel %vm967, %v750, 0
  %v1179 = vsel %vm967, %v753, 0
  %v1181 = vsel %vm967, %v756, 0
  %v1183 = vsel %vm967, %v759, 0
  %v1185 = vsel %vm967, %v762, 0
  %1187 = vmatpush.bf16.msra.mxu0 0
  %1188 = vmatpush.bf16.msra.mxu0 0
  %1189 = vmatpush.bf16.msra.mxu0 0
  %1190 = vmatpush.bf16.msra.mxu0 0
  %1191 = vmatpush.bf16.msra.mxu0 %v1162
  %1192 = vmatpush.bf16.msra.mxu0 %v1161
  %1193 = vmatpush.bf16.msra.mxu0 %v1160
  %1194 = vmatpush.bf16.msra.mxu0 %v1159
  %1195 = vmatmul.bf16.gmra.mxu0 %v1167
  %v1196 = vpop.f32.mrf.mxu0
  %v1197 = vadd.f32 %v1094, %v1196
  %v1198 = vpop.f32.mrf.mxu0
  %v1199 = vadd.f32 %v1096, %v1198
  %1200 = vmatmul.bf16.gmra.mxu0 %v1169
  %v1201 = vpop.f32.mrf.mxu0
  %v1202 = vadd.f32 %v1099, %v1201
  %v1203 = vpop.f32.mrf.mxu0
  %v1204 = vadd.f32 %v1101, %v1203
  %1205 = vmatmul.bf16.gmra.mxu0 %v1171
  %v1206 = vpop.f32.mrf.mxu0
  %v1207 = vadd.f32 %v1104, %v1206
  %v1208 = vpop.f32.mrf.mxu0
  %v1209 = vadd.f32 %v1106, %v1208
  %1210 = vmatmul.bf16.gmra.mxu0 %v1173
  %v1211 = vpop.f32.mrf.mxu0
  %v1212 = vadd.f32 %v1109, %v1211
  %v1213 = vpop.f32.mrf.mxu0
  %v1214 = vadd.f32 %v1111, %v1213
  %1215 = vmatmul.bf16.gmra.mxu0 %v1175
  %v1216 = vpop.f32.mrf.mxu0
  %v1217 = vadd.f32 %v1114, %v1216
  %v1218 = vpop.f32.mrf.mxu0
  %v1219 = vadd.f32 %v1116, %v1218
  %1220 = vmatmul.bf16.gmra.mxu0 %v1177
  %v1221 = vpop.f32.mrf.mxu0
  %v1222 = vadd.f32 %v1119, %v1221
  %v1223 = vpop.f32.mrf.mxu0
  %v1224 = vadd.f32 %v1121, %v1223
  %1225 = vmatmul.bf16.gmra.mxu0 %v1179
  %v1226 = vpop.f32.mrf.mxu0
  %v1227 = vadd.f32 %v1124, %v1226
  %v1228 = vpop.f32.mrf.mxu0
  %v1229 = vadd.f32 %v1126, %v1228
  %1230 = vmatmul.bf16.gmra.mxu0 %v1181
  %v1231 = vpop.f32.mrf.mxu0
  %v1232 = vadd.f32 %v1129, %v1231
  %v1233 = vpop.f32.mrf.mxu0
  %v1234 = vadd.f32 %v1131, %v1233
  %1235 = vmatmul.bf16.gmra.mxu0 %v1183
  %v1236 = vpop.f32.mrf.mxu0
  %v1237 = vadd.f32 %v1134, %v1236
  %v1238 = vpop.f32.mrf.mxu0
  %v1239 = vadd.f32 %v1136, %v1238
  %1240 = vmatmul.bf16.gmra.mxu0 %v1185
  %v1241 = vpop.f32.mrf.mxu0
  %v1242 = vadd.f32 %v1139, %v1241
  %v1243 = vpop.f32.mrf.mxu0
  %v1244 = vadd.f32 %v1141, %v1243
  %1245 = vdwg.mxu0
  %v1246 = vperm.slane %v1025, 0
  %v1247 = vadd.f32 %v1197, %v1246
  %v1248 = vadd.f32 %v1199, %v1246
  %v1249 = vadd.f32 %v1202, %v1246
  %v1250 = vadd.f32 %v1204, %v1246
  %v1251 = vadd.f32 %v1207, %v1246
  %v1252 = vadd.f32 %v1209, %v1246
  %v1253 = vadd.f32 %v1212, %v1246
  %v1254 = vadd.f32 %v1214, %v1246
  %v1255 = vadd.f32 %v1217, %v1246
  %v1256 = vadd.f32 %v1219, %v1246
  %v1257 = vadd.f32 %v1222, %v1246
  %v1258 = vadd.f32 %v1224, %v1246
  %v1259 = vadd.f32 %v1227, %v1246
  %v1260 = vadd.f32 %v1229, %v1246
  %v1261 = vadd.f32 %v1232, %v1246
  %v1262 = vadd.f32 %v1234, %v1246
  %v1263 = vadd.f32 %v1237, %v1246
  %v1264 = vadd.f32 %v1239, %v1246
  %v1265 = vadd.f32 %v1242, %v1246
  %v1266 = vadd.f32 %v1244, %v1246
  %v1267 = vsel %vm967, %v1247, 0.0
  %v1268 = vsel %vm967, %v1248, 0.0
  %v1269 = vadd.f32 %v1267, %v1268
  %v1270 = vsel %vm967, %v1249, 0.0
  %v1271 = vadd.f32 %v1269, %v1270
  %v1272 = vsel %vm967, %v1250, 0.0
  %v1273 = vadd.f32 %v1271, %v1272
  %v1274 = vsel %vm967, %v1251, 0.0
  %v1275 = vadd.f32 %v1273, %v1274
  %v1276 = vsel %vm967, %v1252, 0.0
  %v1277 = vadd.f32 %v1275, %v1276
  %v1278 = vsel %vm967, %v1253, 0.0
  %v1279 = vadd.f32 %v1277, %v1278
  %v1280 = vsel %vm967, %v1254, 0.0
  %v1281 = vadd.f32 %v1279, %v1280
  %v1282 = vsel %vm967, %v1255, 0.0
  %v1283 = vadd.f32 %v1281, %v1282
  %v1284 = vsel %vm967, %v1256, 0.0
  %v1285 = vadd.f32 %v1283, %v1284
  %v1286 = vsel %vm967, %v1257, 0.0
  %v1287 = vadd.f32 %v1285, %v1286
  %v1288 = vsel %vm967, %v1258, 0.0
  %v1289 = vadd.f32 %v1287, %v1288
  %v1290 = vsel %vm967, %v1259, 0.0
  %v1291 = vadd.f32 %v1289, %v1290
  %v1292 = vsel %vm967, %v1260, 0.0
  %v1293 = vadd.f32 %v1291, %v1292
  %v1294 = vsel %vm967, %v1261, 0.0
  %v1295 = vadd.f32 %v1293, %v1294
  %v1296 = vsel %vm967, %v1262, 0.0
  %v1297 = vadd.f32 %v1295, %v1296
  %v1298 = vsel %vm967, %v1263, 0.0
  %v1299 = vadd.f32 %v1297, %v1298
  %v1300 = vsel %vm967, %v1264, 0.0
  %v1301 = vadd.f32 %v1299, %v1300
  %v1302 = vsel %vm967, %v1265, 0.0
  %v1303 = vadd.f32 %v1301, %v1302
  %vm1304 = vcmask 519168
  %v1305 = vsel %vm1304, %v1266, 0.0
  %v1306 = vadd.f32 %v1303, %v1305
  %v1307 = vrot.slane %v1306, 4
  %v1308 = vadd.f32 %v1306, %v1307
  %v1309 = vrot.slane %v1308, 2
  %v1310 = vadd.f32 %v1308, %v1309
  %v1311 = vrot.slane %v1310, 1
  %v1312 = vadd.f32 %v1310, %v1311
  %v1313 = vmul.f32 %v1312, %v922
  %v1314 = vsub.f32 %v1247, %v1313
  %v1315 = vsub.f32 %v1248, %v1313
  %v1316 = vsub.f32 %v1249, %v1313
  %v1317 = vsub.f32 %v1250, %v1313
  %v1318 = vsub.f32 %v1251, %v1313
  %v1319 = vsub.f32 %v1252, %v1313
  %v1320 = vsub.f32 %v1253, %v1313
  %v1321 = vsub.f32 %v1254, %v1313
  %v1322 = vsub.f32 %v1255, %v1313
  %v1323 = vsub.f32 %v1256, %v1313
  %v1324 = vsub.f32 %v1257, %v1313
  %v1325 = vsub.f32 %v1258, %v1313
  %v1326 = vsub.f32 %v1259, %v1313
  %v1327 = vsub.f32 %v1260, %v1313
  %v1328 = vsub.f32 %v1261, %v1313
  %v1329 = vsub.f32 %v1262, %v1313
  %v1330 = vsub.f32 %v1263, %v1313
  %v1331 = vsub.f32 %v1264, %v1313
  %v1332 = vsub.f32 %v1265, %v1313
  %v1333 = vsub.f32 %v1266, %v1313
  %v1334 = vmul.f32 %v1314, %v1314
  %v1335 = vmul.f32 %v1315, %v1315
  %v1336 = vmul.f32 %v1316, %v1316
  %v1337 = vmul.f32 %v1317, %v1317
  %v1338 = vmul.f32 %v1318, %v1318
  %v1339 = vmul.f32 %v1319, %v1319
  %v1340 = vmul.f32 %v1320, %v1320
  %v1341 = vmul.f32 %v1321, %v1321
  %v1342 = vmul.f32 %v1322, %v1322
  %v1343 = vmul.f32 %v1323, %v1323
  %v1344 = vmul.f32 %v1324, %v1324
  %v1345 = vmul.f32 %v1325, %v1325
  %v1346 = vmul.f32 %v1326, %v1326
  %v1347 = vmul.f32 %v1327, %v1327
  %v1348 = vmul.f32 %v1328, %v1328
  %v1349 = vmul.f32 %v1329, %v1329
  %v1350 = vmul.f32 %v1330, %v1330
  %v1351 = vmul.f32 %v1331, %v1331
  %v1352 = vmul.f32 %v1332, %v1332
  %v1353 = vmul.f32 %v1333, %v1333
  %v1354 = vsel %vm967, %v1334, 0.0
  %v1355 = vsel %vm967, %v1335, 0.0
  %v1356 = vadd.f32 %v1354, %v1355
  %v1357 = vsel %vm967, %v1336, 0.0
  %v1358 = vadd.f32 %v1356, %v1357
  %v1359 = vsel %vm967, %v1337, 0.0
  %v1360 = vadd.f32 %v1358, %v1359
  %v1361 = vsel %vm967, %v1338, 0.0
  %v1362 = vadd.f32 %v1360, %v1361
  %v1363 = vsel %vm967, %v1339, 0.0
  %v1364 = vadd.f32 %v1362, %v1363
  %v1365 = vsel %vm967, %v1340, 0.0
  %v1366 = vadd.f32 %v1364, %v1365
  %v1367 = vsel %vm967, %v1341, 0.0
  %v1368 = vadd.f32 %v1366, %v1367
  %v1369 = vsel %vm967, %v1342, 0.0
  %v1370 = vadd.f32 %v1368, %v1369
  %v1371 = vsel %vm967, %v1343, 0.0
  %v1372 = vadd.f32 %v1370, %v1371
  %v1373 = vsel %vm967, %v1344, 0.0
  %v1374 = vadd.f32 %v1372, %v1373
  %v1375 = vsel %vm967, %v1345, 0.0
  %v1376 = vadd.f32 %v1374, %v1375
  %v1377 = vsel %vm967, %v1346, 0.0
  %v1378 = vadd.f32 %v1376, %v1377
  %v1379 = vsel %vm967, %v1347, 0.0
  %v1380 = vadd.f32 %v1378, %v1379
  %v1381 = vsel %vm967, %v1348, 0.0
  %v1382 = vadd.f32 %v1380, %v1381
  %v1383 = vsel %vm967, %v1349, 0.0
  %v1384 = vadd.f32 %v1382, %v1383
  %v1385 = vsel %vm967, %v1350, 0.0
  %v1386 = vadd.f32 %v1384, %v1385
  %v1387 = vsel %vm967, %v1351, 0.0
  %v1388 = vadd.f32 %v1386, %v1387
  %v1389 = vsel %vm967, %v1352, 0.0
  %v1390 = vadd.f32 %v1388, %v1389
  %v1391 = vsel %vm1304, %v1353, 0.0
  %v1392 = vadd.f32 %v1390, %v1391
  %v1393 = vrot.slane %v1392, 4
  %v1394 = vadd.f32 %v1392, %v1393
  %v1395 = vrot.slane %v1394, 2
  %v1396 = vadd.f32 %v1394, %v1395
  %v1397 = vrot.slane %v1396, 1
  %v1398 = vadd.f32 %v1396, %v1397
  %v1399 = vmul.f32 %v1398, %v922
  %v1400 = vadd.f32 %v1399, 1e-05
  %v1401 = vrsqrt.pop %v1400
  %v1402 = vmul.f32 %v1401, %v1400
  %v1403 = vmul.f32 %v1402, %v1401
  %v1404 = vmul.f32 0.5, %v1403
  %v1405 = vsub.f32 1.5, %v1404
  %v1406 = vmul.f32 %v1401, %v1405
  %vm1407 = vweird.f32 %v1400
  %vm1408 = vweird.f32 %v1401
  %vm1409 = vmor %vm1407, %vm1408
  %v1410 = vsel %vm1409, %v1401, %v1406
  %v1411 = vmul.f32 %v1314, %v1410
  %v1412 = vmul.f32 %v1315, %v1410
  %v1413 = vmul.f32 %v1316, %v1410
  %v1414 = vmul.f32 %v1317, %v1410
  %v1415 = vmul.f32 %v1318, %v1410
  %v1416 = vmul.f32 %v1319, %v1410
  %v1417 = vmul.f32 %v1320, %v1410
  %v1418 = vmul.f32 %v1321, %v1410
  %v1419 = vmul.f32 %v1322, %v1410
  %v1420 = vmul.f32 %v1323, %v1410
  %v1421 = vmul.f32 %v1324, %v1410
  %v1422 = vmul.f32 %v1325, %v1410
  %v1423 = vmul.f32 %v1326, %v1410
  %v1424 = vmul.f32 %v1327, %v1410
  %v1425 = vmul.f32 %v1328, %v1410
  %v1426 = vmul.f32 %v1329, %v1410
  %v1427 = vmul.f32 %v1330, %v1410
  %v1428 = vmul.f32 %v1331, %v1410
  %v1429 = vmul.f32 %v1332, %v1410
  %v1430 = vmul.f32 %v1333, %v1410
  %v1431 = vmax.f32 %v1411, 0.0
  %v1432 = vmax.f32 %v1412, 0.0
  %v1433 = vmax.f32 %v1413, 0.0
  %v1434 = vmax.f32 %v1414, 0.0
  %v1435 = vmax.f32 %v1415, 0.0
  %v1436 = vmax.f32 %v1416, 0.0
  %v1437 = vmax.f32 %v1417, 0.0
  %v1438 = vmax.f32 %v1418, 0.0
  %v1439 = vmax.f32 %v1419, 0.0
  %v1440 = vmax.f32 %v1420, 0.0
  %v1441 = vmax.f32 %v1421, 0.0
  %v1442 = vmax.f32 %v1422, 0.0
  %v1443 = vmax.f32 %v1423, 0.0
  %v1444 = vmax.f32 %v1424, 0.0
  %v1445 = vmax.f32 %v1425, 0.0
  %v1446 = vmax.f32 %v1426, 0.0
  %v1447 = vmax.f32 %v1427, 0.0
  %v1448 = vmax.f32 %v1428, 0.0
  %v1449 = vmax.f32 %v1429, 0.0
  %v1450 = vmax.f32 %v1430, 0.0
  %v1451 = vpack.c.bf16 %v1431, %v1431
  %v1452 = vpack.c.bf16 %v1432, %v1432
  %v1453 = vpack.c.bf16 %v1433, %v1433
  %v1454 = vpack.c.bf16 %v1434, %v1434
  %v1455 = vpack.c.bf16 %v1435, %v1435
  %v1456 = vpack.c.bf16 %v1436, %v1436
  %v1457 = vpack.c.bf16 %v1437, %v1437
  %v1458 = vpack.c.bf16 %v1438, %v1438
  %v1459 = vpack.c.bf16 %v1439, %v1439
  %v1460 = vpack.c.bf16 %v1440, %v1440
  %v1461 = vpack.c.bf16 %v1441, %v1441
  %v1462 = vpack.c.bf16 %v1442, %v1442
  %v1463 = vpack.c.bf16 %v1443, %v1443
  %v1464 = vpack.c.bf16 %v1444, %v1444
  %v1465 = vpack.c.bf16 %v1445, %v1445
  %v1466 = vpack.c.bf16 %v1446, %v1446
  %v1467 = vpack.c.bf16 %v1447, %v1447
  %v1468 = vpack.c.bf16 %v1448, %v1448
  %v1469 = vpack.c.bf16 %v1449, %v1449
  %v1470 = vpack.c.bf16 %v1450, %v1450
  %v1491 = vrot.slane %v1431, 1
  %v1492 = vrot.slane %v1432, 1
  %v1493 = vsel %vm345, %v1491, %v1492
  %v1494 = vrot.slane %v1433, 1
  %v1495 = vsel %vm345, %v1492, %v1494
  %v1496 = vrot.slane %v1434, 1
  %v1497 = vsel %vm345, %v1494, %v1496
  %v1498 = vrot.slane %v1435, 1
  %v1499 = vsel %vm345, %v1496, %v1498
  %v1500 = vrot.slane %v1436, 1
  %v1501 = vsel %vm345, %v1498, %v1500
  %v1502 = vrot.slane %v1437, 1
  %v1503 = vsel %vm345, %v1500, %v1502
  %v1504 = vrot.slane %v1438, 1
  %v1505 = vsel %vm345, %v1502, %v1504
  %v1506 = vrot.slane %v1439, 1
  %v1507 = vsel %vm345, %v1504, %v1506
  %v1508 = vrot.slane %v1440, 1
  %v1509 = vsel %vm345, %v1506, %v1508
  %v1510 = vrot.slane %v1441, 1
  %v1511 = vsel %vm345, %v1508, %v1510
  %v1512 = vrot.slane %v1442, 1
  %v1513 = vsel %vm345, %v1510, %v1512
  %v1514 = vrot.slane %v1443, 1
  %v1515 = vsel %vm345, %v1512, %v1514
  %v1516 = vrot.slane %v1444, 1
  %v1517 = vsel %vm345, %v1514, %v1516
  %v1518 = vrot.slane %v1445, 1
  %v1519 = vsel %vm345, %v1516, %v1518
  %v1520 = vrot.slane %v1446, 1
  %v1521 = vsel %vm345, %v1518, %v1520
  %v1522 = vrot.slane %v1447, 1
  %v1523 = vsel %vm345, %v1520, %v1522
  %v1524 = vrot.slane %v1448, 1
  %v1525 = vsel %vm345, %v1522, %v1524
  %v1526 = vrot.slane %v1449, 1
  %v1527 = vsel %vm345, %v1524, %v1526
  %v1528 = vrot.slane %v1450, 1
  %v1529 = vsel %vm345, %v1526, %v1528
  %v1550 = vrot.slane %v1431, 5
  %v1552 = vsel %vm407, %v1528, %v1550
  %v1553 = vrot.slane %v1450, 3
  %v1555 = vrot.slane %v1431, 7
  %v1556 = vrot.slane %v1432, 7
  %v1557 = vsel %vm411, %v1555, %v1556
  %v1558 = vrot.slane %v1433, 7
  %v1559 = vsel %vm411, %v1556, %v1558
  %v1560 = vrot.slane %v1434, 7
  %v1561 = vsel %vm411, %v1558, %v1560
  %v1562 = vrot.slane %v1435, 7
  %v1563 = vsel %vm411, %v1560, %v1562
  %v1564 = vrot.slane %v1436, 7
  %v1565 = vsel %vm411, %v1562, %v1564
  %v1566 = vrot.slane %v1437, 7
  %v1567 = vsel %vm411, %v1564, %v1566
  %v1568 = vrot.slane %v1438, 7
  %v1569 = vsel %vm411, %v1566, %v1568
  %v1570 = vrot.slane %v1439, 7
  %v1571 = vsel %vm411, %v1568, %v1570
  %v1572 = vrot.slane %v1440, 7
  %v1573 = vsel %vm411, %v1570, %v1572
  %v1574 = vrot.slane %v1441, 7
  %v1575 = vsel %vm411, %v1572, %v1574
  %v1576 = vrot.slane %v1442, 7
  %v1577 = vsel %vm411, %v1574, %v1576
  %v1578 = vrot.slane %v1443, 7
  %v1579 = vsel %vm411, %v1576, %v1578
  %v1580 = vrot.slane %v1444, 7
  %v1581 = vsel %vm411, %v1578, %v1580
  %v1582 = vrot.slane %v1445, 7
  %v1583 = vsel %vm411, %v1580, %v1582
  %v1584 = vrot.slane %v1446, 7
  %v1585 = vsel %vm411, %v1582, %v1584
  %v1586 = vrot.slane %v1447, 7
  %v1587 = vsel %vm411, %v1584, %v1586
  %v1588 = vrot.slane %v1448, 7
  %v1589 = vsel %vm411, %v1586, %v1588
  %v1590 = vrot.slane %v1449, 7
  %v1591 = vsel %vm411, %v1588, %v1590
  %v1592 = vrot.slane %v1450, 7
  %v1593 = vsel %vm411, %v1590, %v1592
  %v1614 = vsel %vm411, %v1553, %v1555
  %v1615 = vsel %vm492, %v1493, %v1614
  %v1616 = vsel %vm493, %v1495, %v1557
  %v1617 = vsel %vm494, %v1497, %v1559
  %v1618 = vsel %vm495, %v1499, %v1561
  %v1619 = vsel %vm496, %v1501, %v1563
  %v1620 = vsel %vm497, %v1503, %v1565
  %v1621 = vsel %vm498, %v1505, %v1567
  %v1622 = vsel %vm499, %v1507, %v1569
  %v1623 = vsel %vm500, %v1509, %v1571
  %v1624 = vsel %vm501, %v1511, %v1573
  %v1625 = vsel %vm502, %v1513, %v1575
  %v1626 = vsel %vm503, %v1515, %v1577
  %v1627 = vsel %vm504, %v1517, %v1579
  %v1628 = vsel %vm505, %v1519, %v1581
  %v1629 = vsel %vm506, %v1521, %v1583
  %v1630 = vsel %vm507, %v1523, %v1585
  %v1631 = vsel %vm508, %v1525, %v1587
  %v1632 = vsel %vm509, %v1527, %v1589
  %v1633 = vsel %vm510, %v1529, %v1591
  %v1634 = vsel %vm511, %v1552, %v1593
  %v1635 = vsel %vm552, %v1615, %v1431
  %v1636 = vsel %vm553, %v1616, %v1432
  %v1637 = vsel %vm554, %v1617, %v1433
  %v1638 = vsel %vm555, %v1618, %v1434
  %v1639 = vsel %vm556, %v1619, %v1435
  %v1640 = vsel %vm557, %v1620, %v1436
  %v1641 = vsel %vm558, %v1621, %v1437
  %v1642 = vsel %vm559, %v1622, %v1438
  %v1643 = vsel %vm560, %v1623, %v1439
  %v1644 = vsel %vm561, %v1624, %v1440
  %v1645 = vsel %vm562, %v1625, %v1441
  %v1646 = vsel %vm563, %v1626, %v1442
  %v1647 = vsel %vm564, %v1627, %v1443
  %v1648 = vsel %vm565, %v1628, %v1444
  %v1649 = vsel %vm566, %v1629, %v1445
  %v1650 = vsel %vm567, %v1630, %v1446
  %v1651 = vsel %vm568, %v1631, %v1447
  %v1652 = vsel %vm569, %v1632, %v1448
  %v1653 = vsel %vm570, %v1633, %v1449
  %v1654 = vsel %vm571, %v1634, %v1450
  %v1655 = vpack.c.bf16 %v1635, %v1635
  %v1656 = vpack.c.bf16 %v1636, %v1636
  %v1657 = vpack.c.bf16 %v1637, %v1637
  %v1658 = vpack.c.bf16 %v1638, %v1638
  %v1659 = vpack.c.bf16 %v1639, %v1639
  %v1660 = vpack.c.bf16 %v1640, %v1640
  %v1661 = vpack.c.bf16 %v1641, %v1641
  %v1662 = vpack.c.bf16 %v1642, %v1642
  %v1663 = vpack.c.bf16 %v1643, %v1643
  %v1664 = vpack.c.bf16 %v1644, %v1644
  %v1665 = vpack.c.bf16 %v1645, %v1645
  %v1666 = vpack.c.bf16 %v1646, %v1646
  %v1667 = vpack.c.bf16 %v1647, %v1647
  %v1668 = vpack.c.bf16 %v1648, %v1648
  %v1669 = vpack.c.bf16 %v1649, %v1649
  %v1670 = vpack.c.bf16 %v1650, %v1650
  %v1671 = vpack.c.bf16 %v1651, %v1651
  %v1672 = vpack.c.bf16 %v1652, %v1652
  %v1673 = vpack.c.bf16 %v1653, %v1653
  %v1674 = vpack.c.bf16 %v1654, %v1654
  %v1695 = vunpack.c.l.b16 %v1451
  %v1696 = vunpack.c.l.b16 %v1452
  %v1697 = vunpack.c.l.b16 %v1453
  %v1698 = vunpack.c.l.b16 %v1454
  %v1699 = vunpack.c.l.b16 %v1455
  %v1700 = vunpack.c.l.b16 %v1456
  %v1701 = vunpack.c.l.b16 %v1457
  %v1702 = vunpack.c.l.b16 %v1458
  %v1703 = vunpack.c.l.b16 %v1459
  %v1704 = vunpack.c.l.b16 %v1460
  %v1705 = vunpack.c.l.b16 %v1461
  %v1706 = vunpack.c.l.b16 %v1462
  %v1707 = vunpack.c.l.b16 %v1463
  %v1708 = vunpack.c.l.b16 %v1464
  %v1709 = vunpack.c.l.b16 %v1465
  %v1710 = vunpack.c.l.b16 %v1466
  %v1711 = vunpack.c.l.b16 %v1467
  %v1712 = vunpack.c.l.b16 %v1468
  %v1713 = vunpack.c.l.b16 %v1469
  %v1714 = vunpack.c.l.b16 %v1470
  %v1715 = vpack.c.b16 %v1696, %v1695
  %v1716 = vpack.c.b16 %v1698, %v1697
  %v1717 = vpack.c.b16 %v1700, %v1699
  %v1718 = vpack.c.b16 %v1702, %v1701
  %v1719 = vpack.c.b16 %v1704, %v1703
  %v1720 = vpack.c.b16 %v1706, %v1705
  %v1721 = vpack.c.b16 %v1708, %v1707
  %v1722 = vpack.c.b16 %v1710, %v1709
  %v1723 = vpack.c.b16 %v1712, %v1711
  %v1724 = vpack.c.b16 %v1714, %v1713
  %v1745 = vunpack.c.l.b16 %v1655
  %v1746 = vunpack.c.l.b16 %v1656
  %v1747 = vunpack.c.l.b16 %v1657
  %v1748 = vunpack.c.l.b16 %v1658
  %v1749 = vunpack.c.l.b16 %v1659
  %v1750 = vunpack.c.l.b16 %v1660
  %v1751 = vunpack.c.l.b16 %v1661
  %v1752 = vunpack.c.l.b16 %v1662
  %v1753 = vunpack.c.l.b16 %v1663
  %v1754 = vunpack.c.l.b16 %v1664
  %v1755 = vunpack.c.l.b16 %v1665
  %v1756 = vunpack.c.l.b16 %v1666
  %v1757 = vunpack.c.l.b16 %v1667
  %v1758 = vunpack.c.l.b16 %v1668
  %v1759 = vunpack.c.l.b16 %v1669
  %v1760 = vunpack.c.l.b16 %v1670
  %v1761 = vunpack.c.l.b16 %v1671
  %v1762 = vunpack.c.l.b16 %v1672
  %v1763 = vunpack.c.l.b16 %v1673
  %v1764 = vunpack.c.l.b16 %v1674
  %v1765 = vpack.c.b16 %v1746, %v1745
  %v1766 = vpack.c.b16 %v1748, %v1747
  %v1767 = vpack.c.b16 %v1750, %v1749
  %v1768 = vpack.c.b16 %v1752, %v1751
  %v1769 = vpack.c.b16 %v1754, %v1753
  %v1770 = vpack.c.b16 %v1756, %v1755
  %v1771 = vpack.c.b16 %v1758, %v1757
  %v1772 = vpack.c.b16 %v1760, %v1759
  %v1773 = vpack.c.b16 %v1762, %v1761
  %v1774 = vpack.c.b16 %v1764, %v1763
  %1775 = vrot.lane.b32.xlu0 %v1765, 64
  %v1776 = vpop.permute.xlu0 %1775
  %1777 = vrot.lane.b32.xlu0 %v1766, 64
  %v1778 = vpop.permute.xlu0 %1777
  %1779 = vrot.lane.b32.xlu0 %v1767, 64
  %v1780 = vpop.permute.xlu0 %1779
  %1781 = vrot.lane.b32.xlu0 %v1768, 64
  %v1782 = vpop.permute.xlu0 %1781
  %1783 = vrot.lane.b32.xlu0 %v1769, 64
  %v1784 = vpop.permute.xlu0 %1783
  %1785 = vrot.lane.b32.xlu0 %v1770, 64
  %v1786 = vpop.permute.xlu0 %1785
  %1787 = vrot.lane.b32.xlu0 %v1771, 64
  %v1788 = vpop.permute.xlu0 %1787
  %1789 = vrot.lane.b32.xlu0 %v1772, 64
  %v1790 = vpop.permute.xlu0 %1789
  %1791 = vrot.lane.b32.xlu0 %v1773, 64
  %v1792 = vpop.permute.xlu0 %1791
  %1793 = vrot.lane.b32.xlu0 %v1774, 64
  %v1794 = vpop.permute.xlu0 %1793
  %v1797 = vsel %vm967, %v1715, %v1776
  %v1801 = vsel %vm967, %v1716, %v1778
  %v1805 = vsel %vm967, %v1717, %v1780
  %v1809 = vsel %vm967, %v1718, %v1782
  %v1813 = vsel %vm967, %v1719, %v1784
  %v1817 = vsel %vm967, %v1720, %v1786
  %v1821 = vsel %vm967, %v1721, %v1788
  %v1825 = vsel %vm967, %v1722, %v1790
  %v1829 = vsel %vm967, %v1723, %v1792
  %v1833 = vsel %vm967, %v1724, %v1794
  %v1835 = vld [vmem:[%s8] sm:$0xf]
  %v1836 = vld [vmem:[%s8 + $0x4] sm:$0xf]
  %v1837 = vld [vmem:[%s8 + $0x8] sm:$0xf]
  %v1838 = vld [vmem:[%s8 + $0xc] sm:$0xf]
  %v1839 = vld [vmem:[%s8 + $0x10] sm:$0xf]
  %v1840 = vld [vmem:[%s8 + $0x14] sm:$0xf]
  %v1841 = vld [vmem:[%s8 + $0x18] sm:$0xf]
  %v1842 = vld [vmem:[%s8 + $0x1c] sm:$0xf]
  %v1843 = vld [vmem:[%s8 + $0x20] sm:$0xf]
  %v1844 = vld [vmem:[%s8 + $0x24] sm:$0xf]
  %v1845 = vld [vmem:[%s8 + $0x28] sm:$0xf]
  %v1846 = vld [vmem:[%s8 + $0x2c] sm:$0xf]
  %v1847 = vld [vmem:[%s8 + $0x30] sm:$0xf]
  %v1848 = vld [vmem:[%s8 + $0x34] sm:$0xf]
  %v1849 = vld [vmem:[%s8 + $0x38] sm:$0xf]
  %v1850 = vld [vmem:[%s8 + $0x3c] sm:$0xf]
  %v1860 = vsel %vm805, %v1724, 0
  %1862 = vmatpush.bf16.msra.mxu0 %v1722
  %1863 = vmatpush.bf16.msra.mxu0 %v1721
  %1864 = vmatpush.bf16.msra.mxu0 %v1720
  %1865 = vmatpush.bf16.msra.mxu0 %v1719
  %1866 = vmatpush.bf16.msra.mxu0 %v1718
  %1867 = vmatpush.bf16.msra.mxu0 %v1717
  %1868 = vmatpush.bf16.msra.mxu0 %v1716
  %1869 = vmatpush.bf16.msra.mxu0 %v1715
  %1870 = vmatmul.bf16.gmra.mxu0 %v783
  %v1871 = vpop.f32.mrf.mxu0
  %v1872 = vadd.f32 0.0, %v1871
  %v1873 = vpop.f32.mrf.mxu0
  %v1874 = vadd.f32 0.0, %v1873
  %1875 = vmatmul.bf16.gmra.mxu0 %v785
  %v1876 = vpop.f32.mrf.mxu0
  %v1877 = vadd.f32 0.0, %v1876
  %v1878 = vpop.f32.mrf.mxu0
  %v1879 = vadd.f32 0.0, %v1878
  %1880 = vdwg.mxu0
  %1881 = vmatpush.bf16.msra.mxu0 0
  %1882 = vmatpush.bf16.msra.mxu0 0
  %1883 = vmatpush.bf16.msra.mxu0 0
  %1884 = vmatpush.bf16.msra.mxu0 0
  %1885 = vmatpush.bf16.msra.mxu0 0
  %1886 = vmatpush.bf16.msra.mxu0 0
  %1887 = vmatpush.bf16.msra.mxu0 %v1860
  %1888 = vmatpush.bf16.msra.mxu0 %v1723
  %1889 = vmatmul.bf16.gmra.mxu0 %v800
  %v1890 = vpop.f32.mrf.mxu0
  %v1891 = vadd.f32 %v1872, %v1890
  %v1892 = vpop.f32.mrf.mxu0
  %v1893 = vadd.f32 %v1874, %v1892
  %1894 = vmatmul.bf16.gmra.mxu0 %v803
  %v1895 = vpop.f32.mrf.mxu0
  %v1896 = vadd.f32 %v1877, %v1895
  %v1897 = vpop.f32.mrf.mxu0
  %v1898 = vadd.f32 %v1879, %v1897
  %1899 = vdwg.mxu0
  %v1900 = vmul.f32 %v1891, %v849
  %v1901 = vmul.f32 %v1893, %v854
  %v1902 = vmul.f32 %v1896, %v859
  %v1903 = vmul.f32 %v1898, %v864
  %v1904 = vsel %vm967, %v1431, 0.0
  %v1905 = vsel %vm967, %v1432, 0.0
  %v1906 = vadd.f32 %v1904, %v1905
  %v1907 = vsel %vm967, %v1433, 0.0
  %v1908 = vadd.f32 %v1906, %v1907
  %v1909 = vsel %vm967, %v1434, 0.0
  %v1910 = vadd.f32 %v1908, %v1909
  %v1911 = vsel %vm967, %v1435, 0.0
  %v1912 = vadd.f32 %v1910, %v1911
  %v1913 = vsel %vm967, %v1436, 0.0
  %v1914 = vadd.f32 %v1912, %v1913
  %v1915 = vsel %vm967, %v1437, 0.0
  %v1916 = vadd.f32 %v1914, %v1915
  %v1917 = vsel %vm967, %v1438, 0.0
  %v1918 = vadd.f32 %v1916, %v1917
  %v1919 = vsel %vm967, %v1439, 0.0
  %v1920 = vadd.f32 %v1918, %v1919
  %v1921 = vsel %vm967, %v1440, 0.0
  %v1922 = vadd.f32 %v1920, %v1921
  %v1923 = vsel %vm967, %v1441, 0.0
  %v1924 = vadd.f32 %v1922, %v1923
  %v1925 = vsel %vm967, %v1442, 0.0
  %v1926 = vadd.f32 %v1924, %v1925
  %v1927 = vsel %vm967, %v1443, 0.0
  %v1928 = vadd.f32 %v1926, %v1927
  %v1929 = vsel %vm967, %v1444, 0.0
  %v1930 = vadd.f32 %v1928, %v1929
  %v1931 = vsel %vm967, %v1445, 0.0
  %v1932 = vadd.f32 %v1930, %v1931
  %v1933 = vsel %vm967, %v1446, 0.0
  %v1934 = vadd.f32 %v1932, %v1933
  %v1935 = vsel %vm967, %v1447, 0.0
  %v1936 = vadd.f32 %v1934, %v1935
  %v1937 = vsel %vm967, %v1448, 0.0
  %v1938 = vadd.f32 %v1936, %v1937
  %v1939 = vsel %vm967, %v1449, 0.0
  %v1940 = vadd.f32 %v1938, %v1939
  %v1941 = vsel %vm1304, %v1450, 0.0
  %v1942 = vadd.f32 %v1940, %v1941
  %v1943 = vrot.slane %v1942, 4
  %v1944 = vadd.f32 %v1942, %v1943
  %v1945 = vrot.slane %v1944, 2
  %v1946 = vadd.f32 %v1944, %v1945
  %v1947 = vrot.slane %v1946, 1
  %v1948 = vadd.f32 %v1946, %v1947
  %v1949 = vmul.f32 %v1948, %v922
  %1952 = vrot.lane.b32.xlu0 %v1902, 64
  %v1953 = vpop.permute.xlu0 %1952
  %1954 = vrot.lane.b32.xlu0 %v1903, 64
  %v1955 = vpop.permute.xlu0 %1954
  %v1958 = vsel %vm967, %v1900, %v1953
  %v1959 = vsel %vm967, %v1901, %v1955
  %v1960 = vpack.c.bf16 %v1959, %v1958
  %v1961 = vld [vmem:[%s9] sm:$0xf]
  %v1962 = vld [vmem:[%s9 + $0x4] sm:$0xf]
  %v1963 = vld [vmem:[%s9 + $0x8] sm:$0xf]
  %v1964 = vld [vmem:[%s9 + $0xc] sm:$0xf]
  %v1965 = vld [vmem:[%s9 + $0x10] sm:$0xf]
  %v1966 = vld [vmem:[%s9 + $0x14] sm:$0xf]
  %v1967 = vld [vmem:[%s9 + $0x18] sm:$0xf]
  %v1968 = vld [vmem:[%s9 + $0x1c] sm:$0xf]
  %v1969 = vld [vmem:[%s9 + $0x20] sm:$0xf]
  %v1970 = vld [vmem:[%s9 + $0x24] sm:$0xf]
  %v1971 = vld [vmem:[%s9 + $0x28] sm:$0xf]
  %v1972 = vld [vmem:[%s9 + $0x2c] sm:$0xf]
  %v1973 = vld [vmem:[%s9 + $0x30] sm:$0xf]
  %v1974 = vld [vmem:[%s9 + $0x34] sm:$0xf]
  %v1975 = vld [vmem:[%s9 + $0x38] sm:$0xf]
  %v1976 = vld [vmem:[%s9 + $0x3c] sm:$0xf]
  %v1993 = vunpack.c.l.b16 %v1961
  %v1994 = vunpack.c.l.b16 %v1962
  %v1995 = vunpack.c.l.b16 %v1963
  %v1996 = vunpack.c.l.b16 %v1964
  %v1997 = vunpack.c.l.b16 %v1965
  %v1998 = vunpack.c.l.b16 %v1966
  %v1999 = vunpack.c.l.b16 %v1967
  %v2000 = vunpack.c.l.b16 %v1968
  %v2001 = vunpack.c.l.b16 %v1969
  %v2002 = vunpack.c.l.b16 %v1970
  %v2003 = vunpack.c.l.b16 %v1971
  %v2004 = vunpack.c.l.b16 %v1972
  %v2005 = vunpack.c.l.b16 %v1973
  %v2006 = vunpack.c.l.b16 %v1974
  %v2007 = vunpack.c.l.b16 %v1975
  %v2008 = vunpack.c.l.b16 %v1976
  %v2009 = vpack.c.b16 %v1994, %v1993
  %v2010 = vpack.c.b16 %v1996, %v1995
  %v2011 = vpack.c.b16 %v1998, %v1997
  %v2012 = vpack.c.b16 %v2000, %v1999
  %v2013 = vpack.c.b16 %v2002, %v2001
  %v2014 = vpack.c.b16 %v2004, %v2003
  %v2015 = vpack.c.b16 %v2006, %v2005
  %v2016 = vpack.c.b16 %v2008, %v2007
  %2025 = vmatpush.bf16.msra.mxu0 %v2016
  %2026 = vmatpush.bf16.msra.mxu0 %v2015
  %2027 = vmatpush.bf16.msra.mxu0 %v2014
  %2028 = vmatpush.bf16.msra.mxu0 %v2013
  %2029 = vmatpush.bf16.msra.mxu0 %v2012
  %2030 = vmatpush.bf16.msra.mxu0 %v2011
  %2031 = vmatpush.bf16.msra.mxu0 %v2010
  %2032 = vmatpush.bf16.msra.mxu0 %v2009
  %2033 = vmatmul.bf16.gmra.mxu0 %v1960
  %v2034 = vpop.f32.mrf.mxu0
  %v2035 = vadd.f32 0.0, %v2034
  %v2036 = vpop.f32.mrf.mxu0
  %v2037 = vadd.f32 0.0, %v2036
  %2038 = vdwg.mxu0
  %2041 = vrot.lane.b32.xlu0 %v2035, 96
  %v2042 = vpop.permute.xlu0 %2041
  %2043 = vrot.lane.b32.xlu0 %v2037, 96
  %v2044 = vpop.permute.xlu0 %2043
  %v2047 = vpack.c.bf16 %v2037, %v2035
  %v2048 = vpack.c.bf16 %v2044, %v2042
  %v2049 = vpack.c.bf16 %v1949, %v1949
  %v2050 = vld [vmem:[%s10] sm:$0xf]
  %v2051 = vld [vmem:[%s10 + $0x4] sm:$0xf]
  %v2052 = vld [vmem:[%s10 + $0x8] sm:$0xf]
  %v2053 = vld [vmem:[%s10 + $0xc] sm:$0xf]
  %v2054 = vld [vmem:[%s10 + $0x10] sm:$0xf]
  %v2055 = vld [vmem:[%s10 + $0x14] sm:$0xf]
  %v2056 = vld [vmem:[%s10 + $0x18] sm:$0xf]
  %v2057 = vld [vmem:[%s10 + $0x1c] sm:$0xf]
  %v2066 = vunpack.c.l.b16 %v2050
  %v2067 = vunpack.c.l.b16 %v2051
  %v2068 = vunpack.c.l.b16 %v2052
  %v2069 = vunpack.c.l.b16 %v2053
  %v2070 = vunpack.c.l.b16 %v2054
  %v2071 = vunpack.c.l.b16 %v2055
  %v2072 = vunpack.c.l.b16 %v2056
  %v2073 = vunpack.c.l.b16 %v2057
  %v2074 = vpack.c.b16 %v2067, %v2066
  %v2075 = vpack.c.b16 %v2069, %v2068
  %v2076 = vpack.c.b16 %v2071, %v2070
  %v2077 = vpack.c.b16 %v2073, %v2072
  %v2083 = vsel %vm967, %v2049, 0
  %2085 = vmatpush.bf16.msra.mxu0 0
  %2086 = vmatpush.bf16.msra.mxu0 0
  %2087 = vmatpush.bf16.msra.mxu0 0
  %2088 = vmatpush.bf16.msra.mxu0 0
  %2089 = vmatpush.bf16.msra.mxu0 %v2077
  %2090 = vmatpush.bf16.msra.mxu0 %v2076
  %2091 = vmatpush.bf16.msra.mxu0 %v2075
  %2092 = vmatpush.bf16.msra.mxu0 %v2074
  %2093 = vmatmul.bf16.gmra.mxu0 %v2083
  %v2094 = vpop.f32.mrf.mxu0
  %v2095 = vadd.f32 0.0, %v2094
  %v2096 = vpop.f32.mrf.mxu0
  %2097 = vdwg.mxu0
  %2098 = vmatpush.bf16.msra.mxu0 0
  %2099 = vmatpush.bf16.msra.mxu0 0
  %2100 = vmatpush.bf16.msra.mxu0 0
  %2101 = vmatpush.bf16.msra.mxu0 0
  %2102 = vmatpush.bf16.msra.mxu0 0
  %2103 = vmatpush.bf16.msra.mxu0 0
  %2104 = vmatpush.bf16.msra.mxu0 %v2048
  %2105 = vmatpush.bf16.msra.mxu0 %v2047
  %2106 = vmatmul.bf16.gmra.mxu0 %v1055
  %v2107 = vpop.f32.mrf.mxu0
  %v2108 = vadd.f32 0.0, %v2107
  %v2109 = vpop.f32.mrf.mxu0
  %v2110 = vadd.f32 0.0, %v2109
  %2111 = vmatmul.bf16.gmra.mxu0 %v1058
  %v2112 = vpop.f32.mrf.mxu0
  %v2113 = vadd.f32 0.0, %v2112
  %v2114 = vpop.f32.mrf.mxu0
  %v2115 = vadd.f32 0.0, %v2114
  %2116 = vmatmul.bf16.gmra.mxu0 %v1061
  %v2117 = vpop.f32.mrf.mxu0
  %v2118 = vadd.f32 0.0, %v2117
  %v2119 = vpop.f32.mrf.mxu0
  %v2120 = vadd.f32 0.0, %v2119
  %2121 = vmatmul.bf16.gmra.mxu0 %v1064
  %v2122 = vpop.f32.mrf.mxu0
  %v2123 = vadd.f32 0.0, %v2122
  %v2124 = vpop.f32.mrf.mxu0
  %v2125 = vadd.f32 0.0, %v2124
  %2126 = vmatmul.bf16.gmra.mxu0 %v1067
  %v2127 = vpop.f32.mrf.mxu0
  %v2128 = vadd.f32 0.0, %v2127
  %v2129 = vpop.f32.mrf.mxu0
  %v2130 = vadd.f32 0.0, %v2129
  %2131 = vmatmul.bf16.gmra.mxu0 %v1070
  %v2132 = vpop.f32.mrf.mxu0
  %v2133 = vadd.f32 0.0, %v2132
  %v2134 = vpop.f32.mrf.mxu0
  %v2135 = vadd.f32 0.0, %v2134
  %2136 = vmatmul.bf16.gmra.mxu0 %v1073
  %v2137 = vpop.f32.mrf.mxu0
  %v2138 = vadd.f32 0.0, %v2137
  %v2139 = vpop.f32.mrf.mxu0
  %v2140 = vadd.f32 0.0, %v2139
  %2141 = vmatmul.bf16.gmra.mxu0 %v1076
  %v2142 = vpop.f32.mrf.mxu0
  %v2143 = vadd.f32 0.0, %v2142
  %v2144 = vpop.f32.mrf.mxu0
  %v2145 = vadd.f32 0.0, %v2144
  %2146 = vmatmul.bf16.gmra.mxu0 %v1079
  %v2147 = vpop.f32.mrf.mxu0
  %v2148 = vadd.f32 0.0, %v2147
  %v2149 = vpop.f32.mrf.mxu0
  %v2150 = vadd.f32 0.0, %v2149
  %2151 = vmatmul.bf16.gmra.mxu0 %v1082
  %v2152 = vpop.f32.mrf.mxu0
  %v2153 = vadd.f32 0.0, %v2152
  %v2154 = vpop.f32.mrf.mxu0
  %v2155 = vadd.f32 0.0, %v2154
  %2156 = vdwg.mxu0
  %v2173 = vunpack.c.l.b16 %v1835
  %v2174 = vunpack.c.l.b16 %v1836
  %v2175 = vunpack.c.l.b16 %v1837
  %v2176 = vunpack.c.l.b16 %v1838
  %v2177 = vunpack.c.l.b16 %v1839
  %v2178 = vunpack.c.l.b16 %v1840
  %v2179 = vunpack.c.l.b16 %v1841
  %v2180 = vunpack.c.l.b16 %v1842
  %v2181 = vunpack.c.l.b16 %v1843
  %v2182 = vunpack.c.l.b16 %v1844
  %v2183 = vunpack.c.l.b16 %v1845
  %v2184 = vunpack.c.l.b16 %v1846
  %v2185 = vunpack.c.l.b16 %v1847
  %v2186 = vunpack.c.l.b16 %v1848
  %v2187 = vunpack.c.l.b16 %v1849
  %v2188 = vunpack.c.l.b16 %v1850
  %v2189 = vpack.c.b16 %v2174, %v2173
  %v2190 = vpack.c.b16 %v2176, %v2175
  %v2191 = vpack.c.b16 %v2178, %v2177
  %v2192 = vpack.c.b16 %v2180, %v2179
  %v2193 = vpack.c.b16 %v2182, %v2181
  %v2194 = vpack.c.b16 %v2184, %v2183
  %v2195 = vpack.c.b16 %v2186, %v2185
  %v2196 = vpack.c.b16 %v2188, %v2187
  %2205 = vmatpush.bf16.msra.mxu0 %v2196
  %2206 = vmatpush.bf16.msra.mxu0 %v2195
  %2207 = vmatpush.bf16.msra.mxu0 %v2194
  %2208 = vmatpush.bf16.msra.mxu0 %v2193
  %2209 = vmatpush.bf16.msra.mxu0 %v2192
  %2210 = vmatpush.bf16.msra.mxu0 %v2191
  %2211 = vmatpush.bf16.msra.mxu0 %v2190
  %2212 = vmatpush.bf16.msra.mxu0 %v2189
  %2213 = vmatmul.bf16.gmra.mxu0 %v1797
  %v2214 = vpop.f32.mrf.mxu0
  %v2215 = vadd.f32 %v2108, %v2214
  %v2216 = vpop.f32.mrf.mxu0
  %v2217 = vadd.f32 %v2110, %v2216
  %2218 = vmatmul.bf16.gmra.mxu0 %v1801
  %v2219 = vpop.f32.mrf.mxu0
  %v2220 = vadd.f32 %v2113, %v2219
  %v2221 = vpop.f32.mrf.mxu0
  %v2222 = vadd.f32 %v2115, %v2221
  %2223 = vmatmul.bf16.gmra.mxu0 %v1805
  %v2224 = vpop.f32.mrf.mxu0
  %v2225 = vadd.f32 %v2118, %v2224
  %v2226 = vpop.f32.mrf.mxu0
  %v2227 = vadd.f32 %v2120, %v2226
  %2228 = vmatmul.bf16.gmra.mxu0 %v1809
  %v2229 = vpop.f32.mrf.mxu0
  %v2230 = vadd.f32 %v2123, %v2229
  %v2231 = vpop.f32.mrf.mxu0
  %v2232 = vadd.f32 %v2125, %v2231
  %2233 = vmatmul.bf16.gmra.mxu0 %v1813
  %v2234 = vpop.f32.mrf.mxu0
  %v2235 = vadd.f32 %v2128, %v2234
  %v2236 = vpop.f32.mrf.mxu0
  %v2237 = vadd.f32 %v2130, %v2236
  %2238 = vmatmul.bf16.gmra.mxu0 %v1817
  %v2239 = vpop.f32.mrf.mxu0
  %v2240 = vadd.f32 %v2133, %v2239
  %v2241 = vpop.f32.mrf.mxu0
  %v2242 = vadd.f32 %v2135, %v2241
  %2243 = vmatmul.bf16.gmra.mxu0 %v1821
  %v2244 = vpop.f32.mrf.mxu0
  %v2245 = vadd.f32 %v2138, %v2244
  %v2246 = vpop.f32.mrf.mxu0
  %v2247 = vadd.f32 %v2140, %v2246
  %2248 = vmatmul.bf16.gmra.mxu0 %v1825
  %v2249 = vpop.f32.mrf.mxu0
  %v2250 = vadd.f32 %v2143, %v2249
  %v2251 = vpop.f32.mrf.mxu0
  %v2252 = vadd.f32 %v2145, %v2251
  %2253 = vmatmul.bf16.gmra.mxu0 %v1829
  %v2254 = vpop.f32.mrf.mxu0
  %v2255 = vadd.f32 %v2148, %v2254
  %v2256 = vpop.f32.mrf.mxu0
  %v2257 = vadd.f32 %v2150, %v2256
  %2258 = vmatmul.bf16.gmra.mxu0 %v1833
  %v2259 = vpop.f32.mrf.mxu0
  %v2260 = vadd.f32 %v2153, %v2259
  %v2261 = vpop.f32.mrf.mxu0
  %v2262 = vadd.f32 %v2155, %v2261
  %2263 = vdwg.mxu0
  %v2264 = vperm.slane %v2095, 0
  %v2265 = vadd.f32 %v2215, %v2264
  %v2266 = vadd.f32 %v2217, %v2264
  %v2267 = vadd.f32 %v2220, %v2264
  %v2268 = vadd.f32 %v2222, %v2264
  %v2269 = vadd.f32 %v2225, %v2264
  %v2270 = vadd.f32 %v2227, %v2264
  %v2271 = vadd.f32 %v2230, %v2264
  %v2272 = vadd.f32 %v2232, %v2264
  %v2273 = vadd.f32 %v2235, %v2264
  %v2274 = vadd.f32 %v2237, %v2264
  %v2275 = vadd.f32 %v2240, %v2264
  %v2276 = vadd.f32 %v2242, %v2264
  %v2277 = vadd.f32 %v2245, %v2264
  %v2278 = vadd.f32 %v2247, %v2264
  %v2279 = vadd.f32 %v2250, %v2264
  %v2280 = vadd.f32 %v2252, %v2264
  %v2281 = vadd.f32 %v2255, %v2264
  %v2282 = vadd.f32 %v2257, %v2264
  %v2283 = vadd.f32 %v2260, %v2264
  %v2284 = vadd.f32 %v2262, %v2264
  %v2285 = vsel %vm732, %v2265, 0.0
  %v2286 = vsel %vm732, %v2266, 0.0
  %v2287 = vadd.f32 %v2285, %v2286
  %v2288 = vsel %vm732, %v2267, 0.0
  %v2289 = vadd.f32 %v2287, %v2288
  %v2290 = vsel %vm732, %v2268, 0.0
  %v2291 = vadd.f32 %v2289, %v2290
  %v2292 = vsel %vm732, %v2269, 0.0
  %v2293 = vadd.f32 %v2291, %v2292
  %v2294 = vsel %vm732, %v2270, 0.0
  %v2295 = vadd.f32 %v2293, %v2294
  %v2296 = vsel %vm732, %v2271, 0.0
  %v2297 = vadd.f32 %v2295, %v2296
  %v2298 = vsel %vm732, %v2272, 0.0
  %v2299 = vadd.f32 %v2297, %v2298
  %v2300 = vsel %vm732, %v2273, 0.0
  %v2301 = vadd.f32 %v2299, %v2300
  %v2302 = vsel %vm732, %v2274, 0.0
  %v2303 = vadd.f32 %v2301, %v2302
  %v2304 = vsel %vm732, %v2275, 0.0
  %v2305 = vadd.f32 %v2303, %v2304
  %v2306 = vsel %vm732, %v2276, 0.0
  %v2307 = vadd.f32 %v2305, %v2306
  %v2308 = vsel %vm732, %v2277, 0.0
  %v2309 = vadd.f32 %v2307, %v2308
  %v2310 = vsel %vm732, %v2278, 0.0
  %v2311 = vadd.f32 %v2309, %v2310
  %v2312 = vsel %vm732, %v2279, 0.0
  %v2313 = vadd.f32 %v2311, %v2312
  %v2314 = vsel %vm732, %v2280, 0.0
  %v2315 = vadd.f32 %v2313, %v2314
  %v2316 = vsel %vm732, %v2281, 0.0
  %v2317 = vadd.f32 %v2315, %v2316
  %v2318 = vsel %vm732, %v2282, 0.0
  %v2319 = vadd.f32 %v2317, %v2318
  %v2320 = vsel %vm732, %v2283, 0.0
  %v2321 = vadd.f32 %v2319, %v2320
  %v2322 = vsel %vm907, %v2284, 0.0
  %v2323 = vadd.f32 %v2321, %v2322
  %v2324 = vrot.slane %v2323, 4
  %v2325 = vadd.f32 %v2323, %v2324
  %v2326 = vrot.slane %v2325, 2
  %v2327 = vadd.f32 %v2325, %v2326
  %v2328 = vrot.slane %v2327, 1
  %v2329 = vadd.f32 %v2327, %v2328
  %v2330 = vmul.f32 %v2329, %v922
  %v2331 = vsub.f32 %v2265, %v2330
  %v2332 = vsub.f32 %v2266, %v2330
  %v2333 = vsub.f32 %v2267, %v2330
  %v2334 = vsub.f32 %v2268, %v2330
  %v2335 = vsub.f32 %v2269, %v2330
  %v2336 = vsub.f32 %v2270, %v2330
  %v2337 = vsub.f32 %v2271, %v2330
  %v2338 = vsub.f32 %v2272, %v2330
  %v2339 = vsub.f32 %v2273, %v2330
  %v2340 = vsub.f32 %v2274, %v2330
  %v2341 = vsub.f32 %v2275, %v2330
  %v2342 = vsub.f32 %v2276, %v2330
  %v2343 = vsub.f32 %v2277, %v2330
  %v2344 = vsub.f32 %v2278, %v2330
  %v2345 = vsub.f32 %v2279, %v2330
  %v2346 = vsub.f32 %v2280, %v2330
  %v2347 = vsub.f32 %v2281, %v2330
  %v2348 = vsub.f32 %v2282, %v2330
  %v2349 = vsub.f32 %v2283, %v2330
  %v2350 = vsub.f32 %v2284, %v2330
  %v2351 = vmul.f32 %v2331, %v2331
  %v2352 = vmul.f32 %v2332, %v2332
  %v2353 = vmul.f32 %v2333, %v2333
  %v2354 = vmul.f32 %v2334, %v2334
  %v2355 = vmul.f32 %v2335, %v2335
  %v2356 = vmul.f32 %v2336, %v2336
  %v2357 = vmul.f32 %v2337, %v2337
  %v2358 = vmul.f32 %v2338, %v2338
  %v2359 = vmul.f32 %v2339, %v2339
  %v2360 = vmul.f32 %v2340, %v2340
  %v2361 = vmul.f32 %v2341, %v2341
  %v2362 = vmul.f32 %v2342, %v2342
  %v2363 = vmul.f32 %v2343, %v2343
  %v2364 = vmul.f32 %v2344, %v2344
  %v2365 = vmul.f32 %v2345, %v2345
  %v2366 = vmul.f32 %v2346, %v2346
  %v2367 = vmul.f32 %v2347, %v2347
  %v2368 = vmul.f32 %v2348, %v2348
  %v2369 = vmul.f32 %v2349, %v2349
  %v2370 = vmul.f32 %v2350, %v2350
  %v2371 = vsel %vm732, %v2351, 0.0
  %v2372 = vsel %vm732, %v2352, 0.0
  %v2373 = vadd.f32 %v2371, %v2372
  %v2374 = vsel %vm732, %v2353, 0.0
  %v2375 = vadd.f32 %v2373, %v2374
  %v2376 = vsel %vm732, %v2354, 0.0
  %v2377 = vadd.f32 %v2375, %v2376
  %v2378 = vsel %vm732, %v2355, 0.0
  %v2379 = vadd.f32 %v2377, %v2378
  %v2380 = vsel %vm732, %v2356, 0.0
  %v2381 = vadd.f32 %v2379, %v2380
  %v2382 = vsel %vm732, %v2357, 0.0
  %v2383 = vadd.f32 %v2381, %v2382
  %v2384 = vsel %vm732, %v2358, 0.0
  %v2385 = vadd.f32 %v2383, %v2384
  %v2386 = vsel %vm732, %v2359, 0.0
  %v2387 = vadd.f32 %v2385, %v2386
  %v2388 = vsel %vm732, %v2360, 0.0
  %v2389 = vadd.f32 %v2387, %v2388
  %v2390 = vsel %vm732, %v2361, 0.0
  %v2391 = vadd.f32 %v2389, %v2390
  %v2392 = vsel %vm732, %v2362, 0.0
  %v2393 = vadd.f32 %v2391, %v2392
  %v2394 = vsel %vm732, %v2363, 0.0
  %v2395 = vadd.f32 %v2393, %v2394
  %v2396 = vsel %vm732, %v2364, 0.0
  %v2397 = vadd.f32 %v2395, %v2396
  %v2398 = vsel %vm732, %v2365, 0.0
  %v2399 = vadd.f32 %v2397, %v2398
  %v2400 = vsel %vm732, %v2366, 0.0
  %v2401 = vadd.f32 %v2399, %v2400
  %v2402 = vsel %vm732, %v2367, 0.0
  %v2403 = vadd.f32 %v2401, %v2402
  %v2404 = vsel %vm732, %v2368, 0.0
  %v2405 = vadd.f32 %v2403, %v2404
  %v2406 = vsel %vm732, %v2369, 0.0
  %v2407 = vadd.f32 %v2405, %v2406
  %v2408 = vsel %vm907, %v2370, 0.0
  %v2409 = vadd.f32 %v2407, %v2408
  %v2410 = vrot.slane %v2409, 4
  %v2411 = vadd.f32 %v2409, %v2410
  %v2412 = vrot.slane %v2411, 2
  %v2413 = vadd.f32 %v2411, %v2412
  %v2414 = vrot.slane %v2413, 1
  %v2415 = vadd.f32 %v2413, %v2414
  %v2416 = vmul.f32 %v2415, %v922
  %v2417 = vadd.f32 %v2416, 1e-05
  %v2418 = vrsqrt.pop %v2417
  %v2419 = vmul.f32 %v2418, %v2417
  %v2420 = vmul.f32 %v2419, %v2418
  %v2421 = vmul.f32 0.5, %v2420
  %v2422 = vsub.f32 1.5, %v2421
  %v2423 = vmul.f32 %v2418, %v2422
  %vm2424 = vweird.f32 %v2417
  %vm2425 = vweird.f32 %v2418
  %vm2426 = vmor %vm2424, %vm2425
  %v2427 = vsel %vm2426, %v2418, %v2423
  %v2428 = vmul.f32 %v2331, %v2427
  %v2429 = vmul.f32 %v2332, %v2427
  %v2430 = vmul.f32 %v2333, %v2427
  %v2431 = vmul.f32 %v2334, %v2427
  %v2432 = vmul.f32 %v2335, %v2427
  %v2433 = vmul.f32 %v2336, %v2427
  %v2434 = vmul.f32 %v2337, %v2427
  %v2435 = vmul.f32 %v2338, %v2427
  %v2436 = vmul.f32 %v2339, %v2427
  %v2437 = vmul.f32 %v2340, %v2427
  %v2438 = vmul.f32 %v2341, %v2427
  %v2439 = vmul.f32 %v2342, %v2427
  %v2440 = vmul.f32 %v2343, %v2427
  %v2441 = vmul.f32 %v2344, %v2427
  %v2442 = vmul.f32 %v2345, %v2427
  %v2443 = vmul.f32 %v2346, %v2427
  %v2444 = vmul.f32 %v2347, %v2427
  %v2445 = vmul.f32 %v2348, %v2427
  %v2446 = vmul.f32 %v2349, %v2427
  %v2447 = vmul.f32 %v2350, %v2427
  %v2448 = vmax.f32 %v2428, 0.0
  %v2449 = vmax.f32 %v2429, 0.0
  %v2450 = vmax.f32 %v2430, 0.0
  %v2451 = vmax.f32 %v2431, 0.0
  %v2452 = vmax.f32 %v2432, 0.0
  %v2453 = vmax.f32 %v2433, 0.0
  %v2454 = vmax.f32 %v2434, 0.0
  %v2455 = vmax.f32 %v2435, 0.0
  %v2456 = vmax.f32 %v2436, 0.0
  %v2457 = vmax.f32 %v2437, 0.0
  %v2458 = vmax.f32 %v2438, 0.0
  %v2459 = vmax.f32 %v2439, 0.0
  %v2460 = vmax.f32 %v2440, 0.0
  %v2461 = vmax.f32 %v2441, 0.0
  %v2462 = vmax.f32 %v2442, 0.0
  %v2463 = vmax.f32 %v2443, 0.0
  %v2464 = vmax.f32 %v2444, 0.0
  %v2465 = vmax.f32 %v2445, 0.0
  %v2466 = vmax.f32 %v2446, 0.0
  %v2467 = vmax.f32 %v2447, 0.0
  %v2468 = vpack.c.bf16 %v2449, %v2448
  %v2469 = vpack.c.bf16 %v2451, %v2450
  %v2470 = vpack.c.bf16 %v2453, %v2452
  %v2471 = vpack.c.bf16 %v2455, %v2454
  %v2472 = vpack.c.bf16 %v2457, %v2456
  %v2473 = vpack.c.bf16 %v2459, %v2458
  %v2474 = vpack.c.bf16 %v2461, %v2460
  %v2475 = vpack.c.bf16 %v2463, %v2462
  %v2476 = vpack.c.bf16 %v2465, %v2464
  %v2477 = vpack.c.bf16 %v2467, %v2466
  %v2479 = vsel %vm805, %v2477, 0
  %2481 = vmatpush.bf16.msra.mxu0 %v2475
  %2482 = vmatpush.bf16.msra.mxu0 %v2474
  %2483 = vmatpush.bf16.msra.mxu0 %v2473
  %2484 = vmatpush.bf16.msra.mxu0 %v2472
  %2485 = vmatpush.bf16.msra.mxu0 %v2471
  %2486 = vmatpush.bf16.msra.mxu0 %v2470
  %2487 = vmatpush.bf16.msra.mxu0 %v2469
  %2488 = vmatpush.bf16.msra.mxu0 %v2468
  %2489 = vmatmul.bf16.gmra.mxu0 %v783
  %v2490 = vpop.f32.mrf.mxu0
  %v2491 = vadd.f32 0.0, %v2490
  %v2492 = vpop.f32.mrf.mxu0
  %v2493 = vadd.f32 0.0, %v2492
  %2494 = vmatmul.bf16.gmra.mxu0 %v785
  %v2495 = vpop.f32.mrf.mxu0
  %v2496 = vadd.f32 0.0, %v2495
  %v2497 = vpop.f32.mrf.mxu0
  %v2498 = vadd.f32 0.0, %v2497
  %2499 = vdwg.mxu0
  %2500 = vmatpush.bf16.msra.mxu0 0
  %2501 = vmatpush.bf16.msra.mxu0 0
  %2502 = vmatpush.bf16.msra.mxu0 0
  %2503 = vmatpush.bf16.msra.mxu0 0
  %2504 = vmatpush.bf16.msra.mxu0 0
  %2505 = vmatpush.bf16.msra.mxu0 0
  %2506 = vmatpush.bf16.msra.mxu0 %v2479
  %2507 = vmatpush.bf16.msra.mxu0 %v2476
  %2508 = vmatmul.bf16.gmra.mxu0 %v800
  %v2509 = vpop.f32.mrf.mxu0
  %v2510 = vadd.f32 %v2491, %v2509
  %v2511 = vpop.f32.mrf.mxu0
  %v2512 = vadd.f32 %v2493, %v2511
  %2513 = vmatmul.bf16.gmra.mxu0 %v803
  %v2514 = vpop.f32.mrf.mxu0
  %v2515 = vadd.f32 %v2496, %v2514
  %v2516 = vpop.f32.mrf.mxu0
  %v2517 = vadd.f32 %v2498, %v2516
  %2518 = vdwg.mxu0
  %v2519 = vmul.f32 %v2510, %v849
  %v2520 = vmul.f32 %v2512, %v854
  %v2521 = vmul.f32 %v2515, %v859
  %v2522 = vmul.f32 %v2517, %v864
  %2525 = vrot.lane.b32.xlu0 %v2521, 32
  %v2526 = vpop.permute.xlu0 %2525
  %2527 = vrot.lane.b32.xlu0 %v2522, 32
  %v2528 = vpop.permute.xlu0 %2527
  %v2531 = vsel %vm732, %v2519, %v2526
  %v2532 = vsel %vm732, %v2520, %v2528
  %v2533 = vld [vmem:[%s11] sm:$0x1]
  %v2535 = vperm.slane %v2533, 0
  %v2537 = vmul.f32 %v2531, %v2535
  %v2538 = vmul.f32 %v2532, %v2535
  %v2539 = vsel %vm967, %v2537, 0.0
  %2540 = vadd.xlane.f32.xlu0 %v2539
  %v2541 = vpop.xlane.xlu0 %2540
  %v2542 = vsel %vm967, %v2538, 0.0
  %2543 = vadd.xlane.f32.xlu0 %v2542
  %v2544 = vpop.xlane.xlu0 %2543
  %v2545 = vld [vmem:[#allocation2] sm:$0x1]
  %v2547 = vperm.slane %v2545, 0
  %v2549 = vadd.f32 %v2541, %v2547
  %v2550 = vadd.f32 %v2544, %v2547
  %vm2551 = vcmask 7168
  %2552 = vst.msk [vmem:[%s13] sm:$0xff] %vm2551, %v2549
  %2553 = vst.msk [vmem:[%s13 + $0x8] sm:$0xff] %vm2551, %v2550
  // Predicated region
  $region54: #{equiv_hgnet_forward.1} parent=0 // pred_check
    _
  $region55: #{equiv_hgnet_forward.1} parent=0 // pred_check_branch
    %2555 = sbr.rel (0) target = $region57
  $region56: #{equiv_hgnet_forward.1} parent=0 // pred_region
    _
  $region57: #{equiv_hgnet_forward.1} parent=0 // pred_fallthru
    _
  // Predicated region
  $region58: #{equiv_hgnet_forward.1} parent=0 // pred_check
    _
  $region59: #{equiv_hgnet_forward.1} parent=0 // pred_check_branch
    %2557 = sbr.rel (0) target = $region61
  $region60: #{equiv_hgnet_forward.1} parent=0 // pred_region
    _
  $region61: #{equiv_hgnet_forward.1} parent=0 // pred_fallthru
    _

</llo_original>
